<compile_context>
chip_gen: v7x
topology: tpu7x:2x2x1
jax: 0.10.0
libtpu: 0.0.40
codegen_flags: <defaults>
</compile_context>

<pallas_src>
import math

import jax
import jax.numpy as jnp
from jax.experimental import pallas as pl
from jax.experimental.pallas import tpu as pltpu


def _cdiv(a, b):
    return -(-a // b)


def _round_down_128(v):
    return (int(v) // 128) * 128


# ---------------------------------------------------------------------------
# Kernels
# ---------------------------------------------------------------------------
def _se_full_kernel(x_ref, xse_ref, w1_ref, b1_ref, w2_ref, b2_ref, o_ref):
    """Full-res gate.  x/xse/o: (C, TN); w*: (C, C); b*: (C, 1) f32."""
    # conv_reduce: W1 @ x_se on the MXU, f32 accumulation.  Cast x_se to the
    # weight dtype so bf16 weights take the bf16 MXU path (also implements the
    # optional f32->bf16 matmul downcast chosen by the wrapper).
    a = xse_ref[...].astype(w1_ref.dtype)
    h = jnp.dot(w1_ref[...], a, preferred_element_type=jnp.float32)
    h = jnp.maximum(h + b1_ref[...], 0.0)
    # conv_expand.
    g = jnp.dot(w2_ref[...], h.astype(w2_ref.dtype),
                preferred_element_type=jnp.float32)
    gate = jax.nn.sigmoid(g + b2_ref[...])
    # Gating multiply in the activation dtype (bf16 VALU on v6e/v7x); the
    # result is recast to the input dtype anyway, so the loss is ~1 ulp.
    o_ref[...] = (x_ref[...] * gate.astype(x_ref.dtype)).astype(o_ref.dtype)


def _se_bcast_kernel(x_ref, g_ref, o_ref):
    """Pooled-gate broadcast multiply.  x/o: (TR, TN); g: (TR, 1) f32 logits."""
    gate = jax.nn.sigmoid(g_ref[...].astype(jnp.float32))
    o_ref[...] = (x_ref[...] * gate.astype(x_ref.dtype)).astype(o_ref.dtype)


# ---------------------------------------------------------------------------
# Hardware / tile helpers
# ---------------------------------------------------------------------------
def _hw_info():
    """Returns (vmem_bytes_per_tensorcore, num_tensorcores, device_kind)."""
    kind = ""
    try:
        kind = jax.devices()[0].device_kind.lower()
    except Exception:
        pass
    is_v7 = "v7" in kind
    num_tc = 2 if is_v7 else 1          # v7x: 2 TCs/chip; v5e/v6e: 1
    vmem = None
    try:
        vmem = int(pltpu.get_tpu_info().vmem_capacity_bytes)
    except Exception:
        pass
    if vmem is None or vmem <= 0:
        vmem = 64 * 1024 * 1024 if is_v7 else 128 * 1024 * 1024
    # Guard: if the query reports per-chip (128 MiB) rather than per-TC VMEM
    # on v7x, clamp to the per-TC 64 MiB so the tile math doesn't overshoot.
    if is_v7 and vmem > 64 * 1024 * 1024:
        vmem = 64 * 1024 * 1024
    return vmem, num_tc, kind


def _pick_tile_full(B, C, HW, act_bytes, vmem_cap, num_tc):
    """Spatial lane tile for the full-resolution-gate path."""
    if HW <= 128:
        return HW                                   # full extent: legal block
    budget = int(vmem_cap * 0.7)
    # Weights/biases single-buffered (Buffered(1)) -> one copy resident.
    weight_bytes = 2 * C * C * act_bytes + 2 * C * 4
    # Per spatial column: x, x_se, out double-buffered + f32 temps (h, gate).
    per_col = 3 * 2 * C * act_bytes + 2 * C * 4
    tn_mem = max((budget - weight_bytes) // per_col, 128)
    # Bytes-per-step target (~4 MiB of activation traffic) so the ~0.35 us
    # per-step overhead stays negligible; TN scales ~1/C, no fixed lane cap.
    tn_tgt = (4 << 20) // max(3 * C * act_bytes, 1)
    tn = min(tn_mem, max(tn_tgt, 512), 16384)
    tn = max(128, _round_down_128(tn))
    tn = min(tn, _round_down_128(HW + 127))
    if num_tc > 1:
        # Megacore (v7x only): keep >= 2 grid steps per core and prefer an
        # even split; single-TC v5e/v6e skip this (shrinking only adds
        # per-step overhead there).
        while tn > 128 and B * _cdiv(HW, tn) < 2 * num_tc:
            tn = max(128, _round_down_128(tn // 2))
        if (B * _cdiv(HW, tn)) % num_tc != 0:
            cand = tn - 128
            while cand >= max(128, tn // 2):
                if (B * _cdiv(HW, cand)) % num_tc == 0:
                    tn = cand
                    break
                cand -= 128
    return tn


def _pick_tiles_bcast(rows, HW, act_bytes, vmem_cap, num_tc):
    """Row/lane tiles for the pooled broadcast path over a (rows, HW) view."""
    tr = rows if rows <= 8 else min((rows // 8) * 8, 512)
    if HW <= 128:
        return tr, HW
    budget = int(vmem_cap * 0.7)
    per_col = 2 * 2 * tr * act_bytes + 8       # x + out double-buffered (+gate)
    tn_mem = max(budget // per_col, 128)
    tn_tgt = (8 << 20) // max(2 * tr * act_bytes, 1)
    tn = min(tn_mem, max(tn_tgt, 512), 32768)
    tn = max(128, _round_down_128(tn))
    tn = min(tn, _round_down_128(HW + 127))
    if num_tc > 1:
        while tn > 128 and _cdiv(rows, tr) * _cdiv(HW, tn) < 2 * num_tc:
            tn = max(128, _round_down_128(tn // 2))
    return tr, tn


# ---------------------------------------------------------------------------
# Wrapper
# ---------------------------------------------------------------------------
def se_layer(x, x_se, w_reduce, b_reduce, w_expand, b_expand, *,
             tn=None, matmul_bf16=None):
    """x: (B, C, H, W) NCHW.  x_se: (B, C, H, W) or pooled (B, C, 1, 1).
    w_*: (C, C) (or (C, C, 1, 1)) 1x1-conv weights, b_*: (C,).  Returns NCHW."""
    B, C, H, W = x.shape
    HW = H * W
    assert x_se.shape[0] == B and x_se.shape[1] == C, (x.shape, x_se.shape)
    pooled = (x_se.shape[2], x_se.shape[3]) == (1, 1)   # incl. (H,W)==(1,1)
    if not pooled:
        assert x_se.shape == x.shape, (x_se.shape, x.shape)

    vmem_cap, num_tc, kind = _hw_info()

    base_dtype = jnp.promote_types(x_se.dtype, jnp.asarray(w_reduce).dtype)
    if matmul_bf16 is None:
        # v5e's 4x128^2 MXU makes f32 matmuls compute-bound earliest; downcast
        # the matmul operands there (f32 accumulation keeps the gate accurate).
        matmul_bf16 = (base_dtype == jnp.float32) and (
            ("v5" in kind and C >= 256) or C >= 1024)
    mm_dtype = (jnp.bfloat16 if (matmul_bf16 and base_dtype == jnp.float32)
                else base_dtype)

    w1 = jnp.asarray(w_reduce).reshape(C, C).astype(mm_dtype)
    w2 = jnp.asarray(w_expand).reshape(C, C).astype(mm_dtype)
    b1 = jnp.asarray(b_reduce).reshape(C, 1).astype(jnp.float32)
    b2 = jnp.asarray(b_expand).reshape(C, 1).astype(jnp.float32)

    x_bytes = jnp.dtype(x.dtype).itemsize
    xse_bytes = jnp.dtype(x_se.dtype).itemsize
    mm_bytes = jnp.dtype(mm_dtype).itemsize

    # -------------------- pooled (standard SE) path -------------------------
    if pooled:
        # Gate depends only on (B, C): run the two tiny matmuls once in plain
        # JAX; the kernel is a pure broadcast multiply over a (B*C, H*W) view
        # (free reshape, sublanes stay packed even for small C).
        s = x_se.reshape(B, C).astype(mm_dtype)
        h = jnp.dot(s, w1.T, preferred_element_type=jnp.float32) + b1.reshape(1, C)
        h = jnp.maximum(h, 0.0)
        g = jnp.dot(h.astype(mm_dtype), w2.T,
                    preferred_element_type=jnp.float32) + b2.reshape(1, C)
        rows = B * C
        g = g.reshape(rows, 1)
        xr = x.reshape(rows, HW)
        tr, tn_b = _pick_tiles_bcast(rows, HW, x_bytes, vmem_cap, num_tc)
        if tn is not None:
            tn_b = tn
        grid = (_cdiv(rows, tr), _cdiv(HW, tn_b))
        footprint = 2 * 2 * tr * tn_b * x_bytes + 2 * tr * 4
        cparams = pltpu.CompilerParams(
            dimension_semantics=("parallel", "parallel"),
            vmem_limit_bytes=int(min(vmem_cap,
                                     max(footprint * 5 // 4 + (4 << 20),
                                         16 << 20))))
        out = pl.pallas_call(
            _se_bcast_kernel,
            out_shape=jax.ShapeDtypeStruct((rows, HW), x.dtype),
            grid_spec=pltpu.PrefetchScalarGridSpec(
                num_scalar_prefetch=0,
                grid=grid,
                in_specs=[
                    pl.BlockSpec((tr, tn_b), lambda i, j: (i, j)),   # x
                    pl.BlockSpec((tr, 1), lambda i, j: (i, 0)),      # gate
                ],
                out_specs=pl.BlockSpec((tr, tn_b), lambda i, j: (i, j)),
            ),
            compiler_params=cparams,
        )(xr, g)
        return out.reshape(B, C, H, W)

    # -------------------- full-resolution gate path --------------------------
    xr = x.reshape(B, C, HW)                      # free reshape, no transpose
    sr = x_se.reshape(B, C, HW)
    act_bytes = max(x_bytes, xse_bytes, mm_bytes)
    if tn is None:
        tn = _pick_tile_full(B, C, HW, act_bytes, vmem_cap, num_tc)
    grid = (B, _cdiv(HW, tn))
    cost = pl.CostEstimate(
        flops=4 * B * HW * C * C,
        transcendentals=B * HW * C,
        bytes_accessed=(2 * x.size * x_bytes
                        + x_se.size * xse_bytes
                        + 2 * C * C * mm_bytes))

    def _run(weight_buffers):
        wkw = {}
        wbuf = 2
        if weight_buffers is not None:
            wkw = dict(pipeline_mode=pl.Buffered(weight_buffers))
            wbuf = weight_buffers
        # Need-based VMEM limit: weights * buffer_count + double-buffered
        # activation tiles + f32 temps, plus headroom.
        footprint = (wbuf * (2 * C * C * mm_bytes + 2 * C * 4)
                     + 2 * C * tn * (2 * x_bytes + xse_bytes)
                     + 3 * C * tn * 4)
        cparams = pltpu.CompilerParams(
            dimension_semantics=("parallel", "parallel"),
            vmem_limit_bytes=int(min(vmem_cap,
                                     max(footprint * 5 // 4 + (8 << 20),
                                         16 << 20))))
        out = pl.pallas_call(
            _se_full_kernel,
            out_shape=jax.ShapeDtypeStruct((B, C, HW), x.dtype),
            grid_spec=pltpu.PrefetchScalarGridSpec(
                num_scalar_prefetch=0,
                grid=grid,
                in_specs=[
                    pl.BlockSpec((None, C, tn), lambda b, j: (b, 0, j)),  # x
                    pl.BlockSpec((None, C, tn), lambda b, j: (b, 0, j)),  # x_se
                    pl.BlockSpec((C, C), lambda b, j: (0, 0), **wkw),     # W1
                    pl.BlockSpec((C, 1), lambda b, j: (0, 0), **wkw),     # b1
                    pl.BlockSpec((C, C), lambda b, j: (0, 0), **wkw),     # W2
                    pl.BlockSpec((C, 1), lambda b, j: (0, 0), **wkw),     # b2
                ],
                out_specs=pl.BlockSpec((None, C, tn), lambda b, j: (b, 0, j)),
            ),
            compiler_params=cparams,
            cost_estimate=cost,
        )(xr, sr, w1, b1, w2, b2)
        return jax.block_until_ready(out)

    try:
        # Grid-invariant weights: single-buffer them (halves resident VMEM).
        out = _run(1)
    except Exception:
        # Fall back to default pipelining if Buffered(1) is unsupported.
        out = _run(None)
    return out.reshape(B, C, H, W)


# ---------------------------------------------------------------------------
# Pure-JAX reference (NCHW, 1x1 convs as einsum over the channel dim)
# ---------------------------------------------------------------------------
def se_layer_ref(x, x_se, w_reduce, b_reduce, w_expand, b_expand):
    C = x.shape[1]
    w1 = jnp.asarray(w_reduce).reshape(C, C)
    w2 = jnp.asarray(w_expand).reshape(C, C)
    b1 = jnp.asarray(b_reduce).reshape(C)
    b2 = jnp.asarray(b_expand).reshape(C)
    h = jnp.einsum("oc,bchw->bohw", w1, x_se) + b1[None, :, None, None]
    h = jnp.maximum(h, 0.0)
    g = jnp.einsum("oc,bchw->bohw", w2, h) + b2[None, :, None, None]
    return x * jax.nn.sigmoid(g)


if __name__ == "__main__":
    key = jax.random.PRNGKey(0)
    keys = jax.random.split(key, 8)

    # --- test 1: small f32, full-resolution x_se (module as written) -------
    B, C, H, W = 2, 4, 16, 16
    x = jax.random.normal(keys[0], (B, C, H, W), dtype=jnp.float32)
    x_se = jax.random.normal(keys[1], (B, C, H, W), dtype=jnp.float32)
    w1 = 0.3 * jax.random.normal(keys[2], (C, C), dtype=jnp.float32)
    b1 = 0.1 * jax.random.normal(keys[3], (C,), dtype=jnp.float32)
    w2 = 0.3 * jax.random.normal(keys[4], (C, C), dtype=jnp.float32)
    b2 = 0.1 * jax.random.normal(keys[5], (C,), dtype=jnp.float32)

    out = jax.block_until_ready(se_layer(x, x_se, w1, b1, w2, b2))
    ref = se_layer_ref(x, x_se, w1, b1, w2, b2)
    assert out.shape == (B, C, H, W)
    assert jnp.allclose(out, ref, atol=1e-5, rtol=1e-5), "mismatch (full-res)"

    # --- test 2: pooled (B, C, 1, 1) x_se (standard SE squeeze) ------------
    x_se_p = jnp.mean(x, axis=(2, 3), keepdims=True)
    out_p = jax.block_until_ready(se_layer(x, x_se_p, w1, b1, w2, b2))
    ref_p = se_layer_ref(x, x_se_p, w1, b1, w2, b2)
    assert jnp.allclose(out_p, ref_p, atol=1e-5, rtol=1e-5), "mismatch (pooled)"

    # --- test 3: C=128, ragged spatial (H*W not multiple of 128), bf16 -----
    B3, C3, H3, W3 = 2, 128, 11, 13
    x3 = jax.random.normal(keys[6], (B3, C3, H3, W3), dtype=jnp.bfloat16)
    xs3 = jax.random.normal(keys[7], (B3, C3, H3, W3), dtype=jnp.bfloat16)
    kk = jax.random.split(keys[6], 4)
    w13 = (0.1 * jax.random.normal(kk[0], (C3, C3), jnp.float32)).astype(jnp.bfloat16)
    b13 = (0.1 * jax.random.normal(kk[1], (C3,), jnp.float32)).astype(jnp.bfloat16)
    w23 = (0.1 * jax.random.normal(kk[2], (C3, C3), jnp.float32)).astype(jnp.bfloat16)
    b23 = (0.1 * jax.random.normal(kk[3], (C3,), jnp.float32)).astype(jnp.bfloat16)
    out3 = jax.block_until_ready(se_layer(x3, xs3, w13, b13, w23, b23))
    ref3 = se_layer_ref(x3.astype(jnp.float32), xs3.astype(jnp.float32),
                        w13.astype(jnp.float32), b13.astype(jnp.float32),
                        w23.astype(jnp.float32), b23.astype(jnp.float32))
    assert out3.shape == (B3, C3, H3, W3)
    assert jnp.allclose(out3.astype(jnp.float32), ref3, atol=5e-2, rtol=5e-2), \
        "mismatch (bf16 / ragged)"

    print("KERNEL_OK")
</pallas_src>

<mosaic_0001>
module attributes {stable_mosaic.version = 11 : i64} {
  func.func @_se_full_kernel(%arg0: i32, %arg1: i32, %arg2: memref<1x4x256xf32, #tpu.memory_space<vmem>>, %arg3: memref<1x4x256xf32, #tpu.memory_space<vmem>>, %arg4: memref<4x4xf32, #tpu.memory_space<vmem>>, %arg5: memref<4x1xf32, #tpu.memory_space<vmem>>, %arg6: memref<4x4xf32, #tpu.memory_space<vmem>>, %arg7: memref<4x1xf32, #tpu.memory_space<vmem>>, %arg8: memref<1x4x256xf32, #tpu.memory_space<vmem>>) attributes {dimension_semantics = [#tpu.dimension_semantics<parallel>, #tpu.dimension_semantics<parallel>], iteration_bounds = array<i64: 2, 1>, scalar_prefetch = 0 : i64, scratch_operands = 0 : i64, tpu.core_type = #tpu.core_type<tc>, window_params = [{transform_indices = @transform_0, window_bounds = array<i64: 1, 4, 256>}, {transform_indices = @transform_1, window_bounds = array<i64: 1, 4, 256>}, {pipeline_mode = #tpu.pipeline_mode<synchronous>, transform_indices = @transform_2, window_bounds = array<i64: 4, 4>}, {pipeline_mode = #tpu.pipeline_mode<synchronous>, transform_indices = @transform_3, window_bounds = array<i64: 4, 1>}, {pipeline_mode = #tpu.pipeline_mode<synchronous>, transform_indices = @transform_4, window_bounds = array<i64: 4, 4>}, {pipeline_mode = #tpu.pipeline_mode<synchronous>, transform_indices = @transform_5, window_bounds = array<i64: 4, 1>}, {transform_indices = @transform_6, window_bounds = array<i64: 1, 4, 256>}]} {
    %c0 = arith.constant 0 : index
    %c0_0 = arith.constant 0 : index
    %c0_1 = arith.constant 0 : index
    %0 = vector.load %arg3[%c0, %c0_0, %c0_1] : memref<1x4x256xf32, #tpu.memory_space<vmem>>, vector<1x4x256xf32>
    %1 = vector.shape_cast %0 : vector<1x4x256xf32> to vector<4x256xf32>
    %c0_2 = arith.constant 0 : index
    %c0_3 = arith.constant 0 : index
    %2 = vector.load %arg4[%c0_2, %c0_3] : memref<4x4xf32, #tpu.memory_space<vmem>>, vector<4x4xf32>
    %cst = arith.constant dense<0.000000e+00> : vector<4x256xf32>
    %3 = tpu.matmul %2, %1, %cst {dimension_numbers = #tpu.dot_dimension_numbers<[1], [0], [0], [1], [0, 0, 1, 1], [], []>} : vector<4x4xf32>, vector<4x256xf32>, vector<4x256xf32> -> vector<4x256xf32>
    %c0_4 = arith.constant 0 : index
    %c0_5 = arith.constant 0 : index
    %4 = vector.load %arg5[%c0_4, %c0_5] : memref<4x1xf32, #tpu.memory_space<vmem>>, vector<4x1xf32>
    %5 = vector.broadcast %4 : vector<4x1xf32> to vector<4x256xf32>
    %6 = arith.addf %3, %5 : vector<4x256xf32>
    %cst_6 = arith.constant 0.000000e+00 : f32
    %7 = vector.broadcast %cst_6 : f32 to vector<4x256xf32>
    %8 = arith.maximumf %6, %7 : vector<4x256xf32>
    %c0_7 = arith.constant 0 : index
    %c0_8 = arith.constant 0 : index
    %9 = vector.load %arg6[%c0_7, %c0_8] : memref<4x4xf32, #tpu.memory_space<vmem>>, vector<4x4xf32>
    %cst_9 = arith.constant dense<0.000000e+00> : vector<4x256xf32>
    %10 = tpu.matmul %9, %8, %cst_9 {dimension_numbers = #tpu.dot_dimension_numbers<[1], [0], [0], [1], [0, 0, 1, 1], [], []>} : vector<4x4xf32>, vector<4x256xf32>, vector<4x256xf32> -> vector<4x256xf32>
    %c0_10 = arith.constant 0 : index
    %c0_11 = arith.constant 0 : index
    %11 = vector.load %arg7[%c0_10, %c0_11] : memref<4x1xf32, #tpu.memory_space<vmem>>, vector<4x1xf32>
    %12 = vector.broadcast %11 : vector<4x1xf32> to vector<4x256xf32>
    %13 = arith.addf %10, %12 : vector<4x256xf32>
    %14 = arith.negf %13 : vector<4x256xf32>
    %15 = math.exp %14 : vector<4x256xf32>
    %cst_12 = arith.constant 1.000000e+00 : f32
    %16 = vector.broadcast %cst_12 : f32 to vector<4x256xf32>
    %17 = arith.addf %16, %15 : vector<4x256xf32>
    %18 = arith.divf %16, %17 : vector<4x256xf32>
    %c0_13 = arith.constant 0 : index
    %c0_14 = arith.constant 0 : index
    %c0_15 = arith.constant 0 : index
    %19 = vector.load %arg2[%c0_13, %c0_14, %c0_15] : memref<1x4x256xf32, #tpu.memory_space<vmem>>, vector<1x4x256xf32>
    %20 = vector.shape_cast %19 : vector<1x4x256xf32> to vector<4x256xf32>
    %21 = arith.mulf %20, %18 : vector<4x256xf32>
    %c0_16 = arith.constant 0 : index
    %c0_17 = arith.constant 0 : index
    %c0_18 = arith.constant 0 : index
    %22 = vector.load %arg8[%c0_16, %c0_17, %c0_18] : memref<1x4x256xf32, #tpu.memory_space<vmem>>, vector<1x4x256xf32>
    %23 = vector.shape_cast %22 : vector<1x4x256xf32> to vector<4x256xf32>
    %24 = vector.shape_cast %21 : vector<4x256xf32> to vector<1x4x256xf32>
    tpu.vector_store %arg8[%c0_16, %c0_17, %c0_18], %24 {strides = array<i32>} : memref<1x4x256xf32, #tpu.memory_space<vmem>>, vector<1x4x256xf32>,
    return
  }
  func.func @transform_0(%arg0: i32, %arg1: i32) -> (i32, i32, i32) {
    %c0_i32 = arith.constant 0 : i32
    %c0_i32_0 = arith.constant 0 : i32
    return %arg0, %c0_i32, %arg1 : i32, i32, i32
  }
  func.func @transform_1(%arg0: i32, %arg1: i32) -> (i32, i32, i32) {
    %c0_i32 = arith.constant 0 : i32
    %c0_i32_0 = arith.constant 0 : i32
    return %arg0, %c0_i32, %arg1 : i32, i32, i32
  }
  func.func @transform_2(%arg0: i32, %arg1: i32) -> (i32, i32) {
    %c0_i32 = arith.constant 0 : i32
    %c0_i32_0 = arith.constant 0 : i32
    %c0_i32_1 = arith.constant 0 : i32
    return %c0_i32, %c0_i32_0 : i32, i32
  }
  func.func @transform_3(%arg0: i32, %arg1: i32) -> (i32, i32) {
    %c0_i32 = arith.constant 0 : i32
    %c0_i32_0 = arith.constant 0 : i32
    %c0_i32_1 = arith.constant 0 : i32
    return %c0_i32, %c0_i32_0 : i32, i32
  }
  func.func @transform_4(%arg0: i32, %arg1: i32) -> (i32, i32) {
    %c0_i32 = arith.constant 0 : i32
    %c0_i32_0 = arith.constant 0 : i32
    %c0_i32_1 = arith.constant 0 : i32
    return %c0_i32, %c0_i32_0 : i32, i32
  }
  func.func @transform_5(%arg0: i32, %arg1: i32) -> (i32, i32) {
    %c0_i32 = arith.constant 0 : i32
    %c0_i32_0 = arith.constant 0 : i32
    %c0_i32_1 = arith.constant 0 : i32
    return %c0_i32, %c0_i32_0 : i32, i32
  }
  func.func @transform_6(%arg0: i32, %arg1: i32) -> (i32, i32, i32) {
    %c0_i32 = arith.constant 0 : i32
    %c0_i32_0 = arith.constant 0 : i32
    return %arg0, %c0_i32, %arg1 : i32, i32, i32
  }
}

module attributes {stable_mosaic.version = 11 : i64} {
  func.func @_se_full_kernel(%arg0: i32, %arg1: i32, %arg2: memref<1x4x256xf32, #tpu.memory_space<vmem>>, %arg3: memref<1x4x256xf32, #tpu.memory_space<vmem>>, %arg4: memref<4x4xf32, #tpu.memory_space<vmem>>, %arg5: memref<4x1xf32, #tpu.memory_space<vmem>>, %arg6: memref<4x4xf32, #tpu.memory_space<vmem>>, %arg7: memref<4x1xf32, #tpu.memory_space<vmem>>, %arg8: memref<1x4x256xf32, #tpu.memory_space<vmem>>) attributes {dimension_semantics = [#tpu.dimension_semantics<parallel>, #tpu.dimension_semantics<parallel>], iteration_bounds = array<i64: 2, 1>, scalar_prefetch = 0 : i64, scratch_operands = 0 : i64, tpu.core_type = #tpu.core_type<tc>, window_params = [{transform_indices = @transform_0, window_bounds = array<i64: 1, 4, 256>}, {transform_indices = @transform_1, window_bounds = array<i64: 1, 4, 256>}, {pipeline_mode = #tpu.pipeline_mode<synchronous>, transform_indices = @transform_2, window_bounds = array<i64: 4, 4>}, {pipeline_mode = #tpu.pipeline_mode<synchronous>, transform_indices = @transform_3, window_bounds = array<i64: 4, 1>}, {pipeline_mode = #tpu.pipeline_mode<synchronous>, transform_indices = @transform_4, window_bounds = array<i64: 4, 4>}, {pipeline_mode = #tpu.pipeline_mode<synchronous>, transform_indices = @transform_5, window_bounds = array<i64: 4, 1>}, {transform_indices = @transform_6, window_bounds = array<i64: 1, 4, 256>}]} {
    %c0 = arith.constant 0 : index
    %c0_0 = arith.constant 0 : index
    %c0_1 = arith.constant 0 : index
    %0 = vector.load %arg3[%c0, %c0_0, %c0_1] : memref<1x4x256xf32, #tpu.memory_space<vmem>>, vector<1x4x256xf32>
    %1 = vector.shape_cast %0 : vector<1x4x256xf32> to vector<4x256xf32>
    %c0_2 = arith.constant 0 : index
    %c0_3 = arith.constant 0 : index
    %2 = vector.load %arg4[%c0_2, %c0_3] : memref<4x4xf32, #tpu.memory_space<vmem>>, vector<4x4xf32>
    %cst = arith.constant dense<0.000000e+00> : vector<4x256xf32>
    %3 = tpu.matmul %2, %1, %cst {dimension_numbers = #tpu.dot_dimension_numbers<[1], [0], [0], [1], [0, 0, 1, 1], [], []>} : vector<4x4xf32>, vector<4x256xf32>, vector<4x256xf32> -> vector<4x256xf32>
    %c0_4 = arith.constant 0 : index
    %c0_5 = arith.constant 0 : index
    %4 = vector.load %arg5[%c0_4, %c0_5] : memref<4x1xf32, #tpu.memory_space<vmem>>, vector<4x1xf32>
    %5 = vector.broadcast %4 : vector<4x1xf32> to vector<4x256xf32>
    %6 = arith.addf %3, %5 : vector<4x256xf32>
    %cst_6 = arith.constant 0.000000e+00 : f32
    %7 = vector.broadcast %cst_6 : f32 to vector<4x256xf32>
    %8 = arith.maximumf %6, %7 : vector<4x256xf32>
    %c0_7 = arith.constant 0 : index
    %c0_8 = arith.constant 0 : index
    %9 = vector.load %arg6[%c0_7, %c0_8] : memref<4x4xf32, #tpu.memory_space<vmem>>, vector<4x4xf32>
    %cst_9 = arith.constant dense<0.000000e+00> : vector<4x256xf32>
    %10 = tpu.matmul %9, %8, %cst_9 {dimension_numbers = #tpu.dot_dimension_numbers<[1], [0], [0], [1], [0, 0, 1, 1], [], []>} : vector<4x4xf32>, vector<4x256xf32>, vector<4x256xf32> -> vector<4x256xf32>
    %c0_10 = arith.constant 0 : index
    %c0_11 = arith.constant 0 : index
    %11 = vector.load %arg7[%c0_10, %c0_11] : memref<4x1xf32, #tpu.memory_space<vmem>>, vector<4x1xf32>
    %12 = vector.broadcast %11 : vector<4x1xf32> to vector<4x256xf32>
    %13 = arith.addf %10, %12 : vector<4x256xf32>
    %14 = arith.negf %13 : vector<4x256xf32>
    %15 = math.exp %14 : vector<4x256xf32>
    %cst_12 = arith.constant 1.000000e+00 : f32
    %16 = vector.broadcast %cst_12 : f32 to vector<4x256xf32>
    %17 = arith.addf %16, %15 : vector<4x256xf32>
    %18 = arith.divf %16, %17 : vector<4x256xf32>
    %c0_13 = arith.constant 0 : index
    %c0_14 = arith.constant 0 : index
    %c0_15 = arith.constant 0 : index
    %19 = vector.load %arg2[%c0_13, %c0_14, %c0_15] : memref<1x4x256xf32, #tpu.memory_space<vmem>>, vector<1x4x256xf32>
    %20 = vector.shape_cast %19 : vector<1x4x256xf32> to vector<4x256xf32>
    %21 = arith.mulf %20, %18 : vector<4x256xf32>
    %c0_16 = arith.constant 0 : index
    %c0_17 = arith.constant 0 : index
    %c0_18 = arith.constant 0 : index
    %22 = vector.load %arg8[%c0_16, %c0_17, %c0_18] : memref<1x4x256xf32, #tpu.memory_space<vmem>>, vector<1x4x256xf32>
    %23 = vector.shape_cast %22 : vector<1x4x256xf32> to vector<4x256xf32>
    %24 = vector.shape_cast %21 : vector<4x256xf32> to vector<1x4x256xf32>
    tpu.vector_store %arg8[%c0_16, %c0_17, %c0_18], %24 {strides = array<i32>} : memref<1x4x256xf32, #tpu.memory_space<vmem>>, vector<1x4x256xf32>,
    return
  }
  func.func @transform_0(%arg0: i32, %arg1: i32) -> (i32, i32, i32) {
    %c0_i32 = arith.constant 0 : i32
    %c0_i32_0 = arith.constant 0 : i32
    return %arg0, %c0_i32, %arg1 : i32, i32, i32
  }
  func.func @transform_1(%arg0: i32, %arg1: i32) -> (i32, i32, i32) {
    %c0_i32 = arith.constant 0 : i32
    %c0_i32_0 = arith.constant 0 : i32
    return %arg0, %c0_i32, %arg1 : i32, i32, i32
  }
  func.func @transform_2(%arg0: i32, %arg1: i32) -> (i32, i32) {
    %c0_i32 = arith.constant 0 : i32
    %c0_i32_0 = arith.constant 0 : i32
    %c0_i32_1 = arith.constant 0 : i32
    return %c0_i32, %c0_i32_0 : i32, i32
  }
  func.func @transform_3(%arg0: i32, %arg1: i32) -> (i32, i32) {
    %c0_i32 = arith.constant 0 : i32
    %c0_i32_0 = arith.constant 0 : i32
    %c0_i32_1 = arith.constant 0 : i32
    return %c0_i32, %c0_i32_0 : i32, i32
  }
  func.func @transform_4(%arg0: i32, %arg1: i32) -> (i32, i32) {
    %c0_i32 = arith.constant 0 : i32
    %c0_i32_0 = arith.constant 0 : i32
    %c0_i32_1 = arith.constant 0 : i32
    return %c0_i32, %c0_i32_0 : i32, i32
  }
  func.func @transform_5(%arg0: i32, %arg1: i32) -> (i32, i32) {
    %c0_i32 = arith.constant 0 : i32
    %c0_i32_0 = arith.constant 0 : i32
    %c0_i32_1 = arith.constant 0 : i32
    return %c0_i32, %c0_i32_0 : i32, i32
  }
  func.func @transform_6(%arg0: i32, %arg1: i32) -> (i32, i32, i32) {
    %c0_i32 = arith.constant 0 : i32
    %c0_i32_0 = arith.constant 0 : i32
    return %arg0, %c0_i32, %arg1 : i32, i32, i32
  }
}

</mosaic_0001>

<llo_original>
// kernel: tpu_custom_call.1
$region0: #{tpu_custom_call.1}
  #allocation0 [shape = 'u32[]', space=smem, size = 0x4, offset = 0x4, fixed_abs, tag = 'smem constant byte address 0x4 - core index']
  #allocation1 [shape = 'u32[144,128]{1,0:T(1,128)}', space=vmem, size = 0x12000, scoped, tag = 'internal scratch']
  %s0 = inlined_call_operand.hbm [shape: f32[2,4,256], index: 0, kind: input, shape index: {}]
  %s1 = inlined_call_operand.hbm [shape: f32[2,4,256], index: 1, kind: input, shape index: {}]
  %s2 = inlined_call_operand.vmem [shape: f32[4,4], index: 2, kind: input, shape index: {}]
  %s3 = inlined_call_operand.vmem [shape: f32[4,1], index: 3, kind: input, shape index: {}]
  %s4 = inlined_call_operand.vmem [shape: f32[4,4], index: 4, kind: input, shape index: {}]
  %s5 = inlined_call_operand.vmem [shape: f32[4,1], index: 5, kind: input, shape index: {}]
  %s6 = inlined_call_operand.hbm [shape: f32[2,4,256], index: 6, kind: output, shape index: {}]
  %s7 = sld [smem:[#allocation0]]
  $region65: #{tpu_custom_call.1} parent=0
    _
  %s9 = ssub.s32 1, %s7
  %s10 = scalar_select 0, %s9, %s7
  $region1: #{tpu_custom_call.1} parent=0
    #allocation2 [shape = 'u8[8192]{0}', space=vmem, size = 0x2000, scoped, tag = 'input window, operand 0']
    #allocation3 [shape = 's32[2]{0}', space=sflag, size = 0x8, scoped, tag = 'scoped memory for tpu_custom_call.1']
    #allocation4 [shape = 's32[2]{0}', space=sflag, size = 0x8, scoped, tag = 'scoped memory for tpu_custom_call.1']
    #allocation5 [shape = 'u8[8192]{0}', space=vmem, size = 0x2000, scoped, tag = 'input window, operand 1']
    #allocation6 [shape = 's32[2]{0}', space=sflag, size = 0x8, scoped, tag = 'scoped memory for tpu_custom_call.1']
    #allocation7 [shape = 'u8[8192]{0}', space=vmem, size = 0x2000, scoped, tag = 'output window, operand 0']
    %11 = vsyncpa [#allocation3], 0
    %s12 = scalar_lea.sflag [#allocation3], 1
    %13 = vsyncpa %s12, 0
    %14 = vsyncpa [#allocation6], 0
    %s15 = scalar_lea.sflag [#allocation6], 1
    %16 = vsyncpa %s15, 0
    %17 = vsyncpa [#allocation4], 0
    %s18 = scalar_lea.sflag [#allocation4], 1
    %19 = vsyncpa %s18, 0
    loop: start=0, step=1, limit=4
    $region2: #{tpu_custom_call.1} parent=1 // loop_pre_header
      _
    $region3: #{tpu_custom_call.1} parent=1 // loop_header
      %s21 = sphi 0, %s25
      %p22 = scmp.ge.s32.totalorder %s21, 4
      %s28 = sphi 0, %s40
      %s29 = sphi 0, %s36
      %s30 = sphi 0, %s28
      %s31 = sphi 0, %s29
      %s32 = sphi 0, %s30
      %s33 = sphi 0, %s31
      %s45 = sphi 0, %s47
      %s48 = sphi 0, %s45
      %s49 = sphi 0, %s48
      %s65 = sphi 0, %s49
      %s73 = sphi 0, %s75
      %s76 = sphi 0, %s73
      %s77 = sphi 0, %s76
      %s93 = sphi 0, %s77
      %s97 = sphi 0, %s97
      %s99 = sphi 0, %s97
      %s100 = sphi 0, %s99
      %s114 = sphi 0, %s100
      %s118 = sphi 0, %s118
      %s120 = sphi 0, %s118
      %s121 = sphi 0, %s120
      %s135 = sphi 0, %s121
      %s139 = sphi 0, %s139
      %s141 = sphi 0, %s139
      %s142 = sphi 0, %s141
      %s156 = sphi 0, %s142
      %s160 = sphi 0, %s160
      %s162 = sphi 0, %s160
      %s163 = sphi 0, %s162
      %s177 = sphi 0, %s163
      %s185 = sphi 0, %s187
      %s188 = sphi 0, %s185
      %s189 = sphi 0, %s188
      %s205 = sphi 0, %s189
    $region4: #{tpu_custom_call.1} parent=1 // loop_header_branch
      %24 = sbr.rel (%p22) target = $region8
    $region5: #{tpu_custom_call.1} parent=1 // loop_body
      %s26 = ssub.s32 %s21, 1
      %s27 = ssub.s32 %s21, 2
      %s34 = sadd.s32 1, %s29
      %p35 = scmp.ge.s32.totalorder %s34, 1
      %s36 = scalar_select %p35, 0, %s34
      %s37 = sadd.s32 1, %s28
      %s38 = scalar_select %p35, %s37, %s28
      %p39 = scmp.ge.s32.totalorder %s38, 2
      %s40 = scalar_select %p39, 0, %s38
      %s41 = ssub.s32 %s28, %s40
      %s42 = ssub.s32 %s29, %s36
      %s43 = sor.u32 %s41, %s42
      %p44 = scmp.eq.s32.totalorder %s43, 0
      %s46 = sadd.s32 %s45, 1
      %s47 = scalar_select %p44, %s45, %s46
      %p50 = pneg %p44
      %p51 = scmp.eq.s32.totalorder %s21, 1
      %p52 = por %p50, %p51
      %p53 = scmp.ne.s32.totalorder %s45, %s48
      %p54 = scmp.eq.s32.totalorder %s21, 0
      %p55 = por %p53, %p54
      %p56 = scmp.ne.s32.totalorder %s45, %s48
      %p57 = scmp.eq.s32.totalorder %s26, 1
      %p58 = por %p56, %p57
      %p59 = scmp.ne.s32.totalorder %s48, %s49
      %p60 = scmp.eq.s32.totalorder %s26, 0
      %p61 = por %p59, %p60
      %p62 = scmp.ne.s32.totalorder %s48, %s49
      %p63 = scmp.eq.s32.totalorder %s27, 1
      %p64 = por %p62, %p63
      %p66 = scmp.ne.s32.totalorder %s49, %s65
      %p67 = scmp.eq.s32.totalorder %s27, 0
      %p68 = por %p66, %p67
      %s69 = ssub.s32 %s28, %s40
      %s70 = ssub.s32 %s29, %s36
      %s71 = sor.u32 %s69, %s70
      %p72 = scmp.eq.s32.totalorder %s71, 0
      %s74 = sadd.s32 %s73, 1
      %s75 = scalar_select %p72, %s73, %s74
      %p78 = pneg %p72
      %p79 = scmp.eq.s32.totalorder %s21, 1
      %p80 = por %p78, %p79
      %p81 = scmp.ne.s32.totalorder %s73, %s76
      %p82 = scmp.eq.s32.totalorder %s21, 0
      %p83 = por %p81, %p82
      %p84 = scmp.ne.s32.totalorder %s73, %s76
      %p85 = scmp.eq.s32.totalorder %s26, 1
      %p86 = por %p84, %p85
      %p87 = scmp.ne.s32.totalorder %s76, %s77
      %p88 = scmp.eq.s32.totalorder %s26, 0
      %p89 = por %p87, %p88
      %p90 = scmp.ne.s32.totalorder %s76, %s77
      %p91 = scmp.eq.s32.totalorder %s27, 1
      %p92 = por %p90, %p91
      %p94 = scmp.ne.s32.totalorder %s77, %s93
      %p95 = scmp.eq.s32.totalorder %s27, 0
      %p96 = por %p94, %p95
      %s98 = sadd.s32 %s97, 1
      %p101 = scmp.eq.s32.totalorder %s21, 1
      %p102 = scmp.ne.s32.totalorder %s97, %s99
      %p103 = scmp.eq.s32.totalorder %s21, 0
      %p104 = por %p102, %p103
      %p105 = scmp.ne.s32.totalorder %s97, %s99
      %p106 = scmp.eq.s32.totalorder %s26, 1
      %p107 = por %p105, %p106
      %p108 = scmp.ne.s32.totalorder %s99, %s100
      %p109 = scmp.eq.s32.totalorder %s26, 0
      %p110 = por %p108, %p109
      %p111 = scmp.ne.s32.totalorder %s99, %s100
      %p112 = scmp.eq.s32.totalorder %s27, 1
      %p113 = por %p111, %p112
      %p115 = scmp.ne.s32.totalorder %s100, %s114
      %p116 = scmp.eq.s32.totalorder %s27, 0
      %p117 = por %p115, %p116
      %s119 = sadd.s32 %s118, 1
      %p122 = scmp.eq.s32.totalorder %s21, 1
      %p123 = scmp.ne.s32.totalorder %s118, %s120
      %p124 = scmp.eq.s32.totalorder %s21, 0
      %p125 = por %p123, %p124
      %p126 = scmp.ne.s32.totalorder %s118, %s120
      %p127 = scmp.eq.s32.totalorder %s26, 1
      %p128 = por %p126, %p127
      %p129 = scmp.ne.s32.totalorder %s120, %s121
      %p130 = scmp.eq.s32.totalorder %s26, 0
      %p131 = por %p129, %p130
      %p132 = scmp.ne.s32.totalorder %s120, %s121
      %p133 = scmp.eq.s32.totalorder %s27, 1
      %p134 = por %p132, %p133
      %p136 = scmp.ne.s32.totalorder %s121, %s135
      %p137 = scmp.eq.s32.totalorder %s27, 0
      %p138 = por %p136, %p137
      %s140 = sadd.s32 %s139, 1
      %p143 = scmp.eq.s32.totalorder %s21, 1
      %p144 = scmp.ne.s32.totalorder %s139, %s141
      %p145 = scmp.eq.s32.totalorder %s21, 0
      %p146 = por %p144, %p145
      %p147 = scmp.ne.s32.totalorder %s139, %s141
      %p148 = scmp.eq.s32.totalorder %s26, 1
      %p149 = por %p147, %p148
      %p150 = scmp.ne.s32.totalorder %s141, %s142
      %p151 = scmp.eq.s32.totalorder %s26, 0
      %p152 = por %p150, %p151
      %p153 = scmp.ne.s32.totalorder %s141, %s142
      %p154 = scmp.eq.s32.totalorder %s27, 1
      %p155 = por %p153, %p154
      %p157 = scmp.ne.s32.totalorder %s142, %s156
      %p158 = scmp.eq.s32.totalorder %s27, 0
      %p159 = por %p157, %p158
      %s161 = sadd.s32 %s160, 1
      %p164 = scmp.eq.s32.totalorder %s21, 1
      %p165 = scmp.ne.s32.totalorder %s160, %s162
      %p166 = scmp.eq.s32.totalorder %s21, 0
      %p167 = por %p165, %p166
      %p168 = scmp.ne.s32.totalorder %s160, %s162
      %p169 = scmp.eq.s32.totalorder %s26, 1
      %p170 = por %p168, %p169
      %p171 = scmp.ne.s32.totalorder %s162, %s163
      %p172 = scmp.eq.s32.totalorder %s26, 0
      %p173 = por %p171, %p172
      %p174 = scmp.ne.s32.totalorder %s162, %s163
      %p175 = scmp.eq.s32.totalorder %s27, 1
      %p176 = por %p174, %p175
      %p178 = scmp.ne.s32.totalorder %s163, %s177
      %p179 = scmp.eq.s32.totalorder %s27, 0
      %p180 = por %p178, %p179
      %s181 = ssub.s32 %s28, %s40
      %s182 = ssub.s32 %s29, %s36
      %s183 = sor.u32 %s181, %s182
      %p184 = scmp.eq.s32.totalorder %s183, 0
      %s186 = sadd.s32 %s185, 1
      %s187 = scalar_select %p184, %s185, %s186
      %p190 = pneg %p184
      %p191 = scmp.eq.s32.totalorder %s21, 1
      %p192 = por %p190, %p191
      %p193 = scmp.ne.s32.totalorder %s185, %s188
      %p194 = scmp.eq.s32.totalorder %s21, 0
      %p195 = por %p193, %p194
      %p196 = scmp.ne.s32.totalorder %s185, %s188
      %p197 = scmp.eq.s32.totalorder %s26, 1
      %p198 = por %p196, %p197
      %p199 = scmp.ne.s32.totalorder %s188, %s189
      %p200 = scmp.eq.s32.totalorder %s26, 0
      %p201 = por %p199, %p200
      %p202 = scmp.ne.s32.totalorder %s188, %s189
      %p203 = scmp.eq.s32.totalorder %s27, 1
      %p204 = por %p202, %p203
      %p206 = scmp.ne.s32.totalorder %s189, %s205
      %p207 = scmp.eq.s32.totalorder %s27, 0
      %p208 = por %p206, %p207
      %p209 = scmp.le.s32.totalorder 1, %s21
      %p210 = scmp.lt.s32.totalorder %s21, 3
      %p211 = pnand %p209, %p210
      %p212 = pneg %p211
      // Predicated region
      $region9: #{tpu_custom_call.1} parent=5 // pred_check
        _
      $region10: #{tpu_custom_call.1} parent=5 // pred_check_branch
        %214 = sbr.rel (%p211) target = $region12
      $region11: #{tpu_custom_call.1} parent=5 // pred_region
        %s215 = ssub.s32 %s21, 1
        // Predicated region
        $region13: #{tpu_custom_call.1} parent=11 // pred_check
          %p216 = pneg %p110
        $region14: #{tpu_custom_call.1} parent=11 // pred_check_branch
          %218 = sbr.rel (%p216) target = $region16
        $region15: #{tpu_custom_call.1} parent=11 // pred_region
          _
        $region16: #{tpu_custom_call.1} parent=11 // pred_fallthru
          _
        // Predicated region
        $region17: #{tpu_custom_call.1} parent=11 // pred_check
          %p219 = pneg %p131
        $region18: #{tpu_custom_call.1} parent=11 // pred_check_branch
          %221 = sbr.rel (%p219) target = $region20
        $region19: #{tpu_custom_call.1} parent=11 // pred_region
          _
        $region20: #{tpu_custom_call.1} parent=11 // pred_fallthru
          _
        // Predicated region
        $region21: #{tpu_custom_call.1} parent=11 // pred_check
          %p222 = pneg %p152
        $region22: #{tpu_custom_call.1} parent=11 // pred_check_branch
          %224 = sbr.rel (%p222) target = $region24
        $region23: #{tpu_custom_call.1} parent=11 // pred_region
          _
        $region24: #{tpu_custom_call.1} parent=11 // pred_fallthru
          _
        // Predicated region
        $region25: #{tpu_custom_call.1} parent=11 // pred_check
          %p225 = pneg %p173
        $region26: #{tpu_custom_call.1} parent=11 // pred_check_branch
          %227 = sbr.rel (%p225) target = $region28
        $region27: #{tpu_custom_call.1} parent=11 // pred_region
          _
        $region28: #{tpu_custom_call.1} parent=11 // pred_fallthru
          _
      $region12: #{tpu_custom_call.1} parent=5 // pred_fallthru
        _
      %p228 = scmp.lt.s32.totalorder %s21, 2
      // Predicated region
      $region29: #{tpu_custom_call.1} parent=5 // pred_check
        %p229 = pneg %p228
      $region30: #{tpu_custom_call.1} parent=5 // pred_check_branch
        %231 = sbr.rel (%p229) target = $region32
      $region31: #{tpu_custom_call.1} parent=5 // pred_region
        // Predicated region
        $region33: #{tpu_custom_call.1} parent=31 // pred_check
          %p232 = pneg %p55
        $region34: #{tpu_custom_call.1} parent=31 // pred_check_branch
          %234 = sbr.rel (%p232) target = $region36
        $region35: #{tpu_custom_call.1} parent=31 // pred_region
          %s235 = sand.u32 %s45, 1
          %s236 = scalar_lea.sflag [#allocation3], %s235
          %s237 = sand.u32 %s45, 1
          %s238 = smul.addr %s237, 8
          %s239 = scalar_lea.vmem [#allocation2], %s238
          %s240 = smul.u32 2, %s29
          %s242 = ssub.s32 128, 128
          %243 = vsyncadd %s236, %s242
          %s244 = smul.addr %s28, 2
          %s245 = sadd.s32 %s240, %s244
          %s246 = smul.addr %s245, 64
          %s247 = scalar_lea.hbm %s0, %s246
          %s249 = sshll.u32 %s239, 4
          %s250 = int_to_ptr.vmem [resolvable:$true] %s249
          %252 = dma.hbm_to_vmem [thread:$0]  %s247, 128, %s250, %s236
        $region36: #{tpu_custom_call.1} parent=31 // pred_fallthru
          _
        // Predicated region
        $region37: #{tpu_custom_call.1} parent=31 // pred_check
          %p253 = pneg %p83
        $region38: #{tpu_custom_call.1} parent=31 // pred_check_branch
          %255 = sbr.rel (%p253) target = $region40
        $region39: #{tpu_custom_call.1} parent=31 // pred_region
          %s256 = sand.u32 %s73, 1
          %s257 = scalar_lea.sflag [#allocation6], %s256
          %s258 = sand.u32 %s73, 1
          %s259 = smul.addr %s258, 8
          %s260 = scalar_lea.vmem [#allocation5], %s259
          %s261 = smul.u32 2, %s29
          %s263 = ssub.s32 128, 128
          %264 = vsyncadd %s257, %s263
          %s265 = smul.addr %s28, 2
          %s266 = sadd.s32 %s261, %s265
          %s267 = smul.addr %s266, 64
          %s268 = scalar_lea.hbm %s1, %s267
          %s270 = sshll.u32 %s260, 4
          %s271 = int_to_ptr.vmem [resolvable:$true] %s270
          %273 = dma.hbm_to_vmem [thread:$0]  %s268, 128, %s271, %s257
        $region40: #{tpu_custom_call.1} parent=31 // pred_fallthru
          _
      $region32: #{tpu_custom_call.1} parent=5 // pred_fallthru
        _
      %p274 = scmp.le.s32.totalorder 1, %s21
      %p275 = scmp.lt.s32.totalorder %s21, 3
      %p276 = pnand %p274, %p275
      %p277 = pneg %p276
      // Predicated region
      $region41: #{tpu_custom_call.1} parent=5 // pred_check
        _
      $region42: #{tpu_custom_call.1} parent=5 // pred_check_branch
        %279 = sbr.rel (%p276) target = $region44
      $region43: #{tpu_custom_call.1} parent=5 // pred_region
        %s280 = ssub.s32 %s21, 1
        %s281 = sand.u32 %s48, 1
        %s282 = scalar_lea.sflag [#allocation3], %s281
        %s283 = sand.u32 %s48, 1
        %s284 = smul.addr %s283, 8
        %s285 = scalar_lea.vmem [#allocation2], %s284
        // Predicated region
        $region45: #{tpu_custom_call.1} parent=43 // pred_check
          %p286 = pneg %p61
        $region46: #{tpu_custom_call.1} parent=43 // pred_check_branch
          %288 = sbr.rel (%p286) target = $region48
        $region47: #{tpu_custom_call.1} parent=43 // pred_region
          %289 = dma.done %s282, 128
        $region48: #{tpu_custom_call.1} parent=43 // pred_fallthru
          _
        %s290 = sand.u32 %s76, 1
        %s291 = scalar_lea.sflag [#allocation6], %s290
        %s292 = sand.u32 %s76, 1
        %s293 = smul.addr %s292, 8
        %s294 = scalar_lea.vmem [#allocation5], %s293
        // Predicated region
        $region49: #{tpu_custom_call.1} parent=43 // pred_check
          %p295 = pneg %p89
        $region50: #{tpu_custom_call.1} parent=43 // pred_check_branch
          %297 = sbr.rel (%p295) target = $region52
        $region51: #{tpu_custom_call.1} parent=43 // pred_region
          %298 = dma.done %s291, 128
        $region52: #{tpu_custom_call.1} parent=43 // pred_fallthru
          _
        %s299 = sand.u32 %s48, 1
        %s300 = scalar_lea.sflag [#allocation3], %s299
        %s301 = sand.u32 %s48, 1
        %s302 = smul.addr %s301, 8
        %s303 = scalar_lea.vmem [#allocation2], %s302
        %p304 = pneg %p61
        %p305 = pneg %p58
        %s306 = sand.u32 %s76, 1
        %s307 = scalar_lea.sflag [#allocation6], %s306
        %s308 = sand.u32 %s76, 1
        %s309 = smul.addr %s308, 8
        %s310 = scalar_lea.vmem [#allocation5], %s309
        %p311 = pneg %p89
        %p312 = pneg %p86
        %p313 = pneg %p110
        %p314 = pneg %p107
        %p315 = pneg %p131
        %p316 = pneg %p128
        %p317 = pneg %p152
        %p318 = pneg %p149
        %p319 = pneg %p173
        %p320 = pneg %p170
        %p321 = pneg %p201
        %p322 = pneg %p198
        %s323 = sand.u32 %s188, 1
        %s324 = scalar_lea.sflag [#allocation4], %s323
        %s325 = sand.u32 %s188, 1
        %s326 = smul.addr %s325, 8
        %s327 = scalar_lea.vmem [#allocation7], %s326
        %s328 = smul.u32 2, %s31
        %s329 = smul.u32 2, %s31
        %s330 = smul.u32 2, %s31
        %v331 = vld [vmem:[%s294] sm:$0xff]
        %v332 = vld [vmem:[%s2] sm:$0xf]
        %v333 = vld [vmem:[%s3] sm:$0xf]
        %335 = vset.pattern.permute.xlu0 0
        %336 = vperm.xlu0 %335, %v333
        %v337 = vpop.permute.xlu0 %336
        %v340 = vcombine.high %v331, %v331
        %vm341 = vcmask 31744
        %v343 = vsel %vm341, %v332, 0
        %vm345 = vcmask 1043456
        %v346 = vsel %vm345, %v331, 0
        %v348 = vsel %vm345, %v340, 0
        %350 = vmatprep.subr.mxu0 %v348
        %351 = vmatpush1.msra.mxu0 %v346
        %352 = vmatprep.subr.mxu0 0.0
        %353 = vmatpush1.msra.mxu0 0.0
        %354 = vmatprep.subr.mxu0 0.0
        %355 = vmatpush1.msra.mxu0 0.0
        %356 = vmatprep.subr.mxu0 0.0
        %357 = vmatpush1.msra.mxu0 0.0
        %358 = vmatprep.subr.mxu0 0.0
        %359 = vmatpush1.msra.mxu0 0.0
        %360 = vmatprep.subr.mxu0 0.0
        %361 = vmatpush1.msra.mxu0 0.0
        %362 = vmatprep.subr.mxu0 0.0
        %363 = vmatpush1.msra.mxu0 0.0
        %364 = vmatprep.subr.mxu0 0.0
        %365 = vmatpush1.msra.mxu0 0.0
        %366 = vmatprep.subr.mxu0 0.0
        %367 = vmatpush1.msra.mxu0 0.0
        %368 = vmatprep.subr.mxu0 0.0
        %369 = vmatpush1.msra.mxu0 0.0
        %370 = vmatprep.subr.mxu0 0.0
        %371 = vmatpush1.msra.mxu0 0.0
        %372 = vmatprep.subr.mxu0 0.0
        %373 = vmatpush1.msra.mxu0 0.0
        %374 = vmatprep.subr.mxu0 0.0
        %375 = vmatpush1.msra.mxu0 0.0
        %376 = vmatprep.subr.mxu0 0.0
        %377 = vmatpush1.msra.mxu0 0.0
        %378 = vmatprep.subr.mxu0 0.0
        %379 = vmatpush1.msra.mxu0 0.0
        %380 = vmatprep.subr.mxu0 0.0
        %381 = vmatpush1.msra.mxu0 0.0
        %382 = vmatprep.subr.mxu0 0.0
        %383 = vmatpush1.msra.mxu0 0.0
        %384 = vmatprep.subr.mxu0 0.0
        %385 = vmatpush1.msra.mxu0 0.0
        %386 = vmatprep.subr.mxu0 0.0
        %387 = vmatpush1.msra.mxu0 0.0
        %388 = vmatprep.subr.mxu0 0.0
        %389 = vmatpush1.msra.mxu0 0.0
        %390 = vmatprep.subr.mxu0 0.0
        %391 = vmatpush1.msra.mxu0 0.0
        %392 = vmatprep.subr.mxu0 0.0
        %393 = vmatpush1.msra.mxu0 0.0
        %394 = vmatprep.subr.mxu0 0.0
        %395 = vmatpush1.msra.mxu0 0.0
        %396 = vmatprep.subr.mxu0 0.0
        %397 = vmatpush1.msra.mxu0 0.0
        %398 = vmatprep.subr.mxu0 0.0
        %399 = vmatpush1.msra.mxu0 0.0
        %400 = vmatprep.subr.mxu0 0.0
        %401 = vmatpush1.msra.mxu0 0.0
        %402 = vmatprep.subr.mxu0 0.0
        %403 = vmatpush1.msra.mxu0 0.0
        %404 = vmatprep.subr.mxu0 0.0
        %405 = vmatpush1.msra.mxu0 0.0
        %406 = vmatprep.subr.mxu0 0.0
        %407 = vmatpush1.msra.mxu0 0.0
        %408 = vmatprep.subr.mxu0 0.0
        %409 = vmatpush1.msra.mxu0 0.0
        %410 = vmatprep.subr.mxu0 0.0
        %411 = vmatpush1.msra.mxu0 0.0
        %412 = vmatprep.subr.mxu0 0.0
        %413 = vmatpush1.msra.mxu0 0.0
        %414 = vmatprep.mubr.f32.mxu0 0.0
        %415 = vmatmul.mubr.f32.gmra.mrb[0].mxu0 %v343
        %v416 = vpop.f32.mrb[0].mxu0
        %v417 = vadd.f32 %v337, %v416
        %v418 = vpop.f32.mrb[0].mxu0
        %v419 = vadd.f32 %v337, %v418
        %420 = vdwg.mxu0
        %v421 = vmax.f32 %v417, 0.0
        %v422 = vmax.f32 %v419, 0.0
        %v423 = vld [vmem:[%s4] sm:$0xf]
        %v424 = vld [vmem:[%s5] sm:$0xf]
        %426 = vset.pattern.permute.xlu0 0
        %427 = vperm.xlu0 %426, %v424
        %v428 = vpop.permute.xlu0 %427
        %v431 = vsel %vm341, %v423, 0
        %v434 = vsel %vm345, %v421, 0
        %v437 = vsel %vm345, %v422, 0
        %439 = vmatprep.subr.mxu0 %v437
        %440 = vmatpush1.msra.mxu0 %v434
        %441 = vmatprep.subr.mxu0 0.0
        %442 = vmatpush1.msra.mxu0 0.0
        %443 = vmatprep.subr.mxu0 0.0
        %444 = vmatpush1.msra.mxu0 0.0
        %445 = vmatprep.subr.mxu0 0.0
        %446 = vmatpush1.msra.mxu0 0.0
        %447 = vmatprep.subr.mxu0 0.0
        %448 = vmatpush1.msra.mxu0 0.0
        %449 = vmatprep.subr.mxu0 0.0
        %450 = vmatpush1.msra.mxu0 0.0
        %451 = vmatprep.subr.mxu0 0.0
        %452 = vmatpush1.msra.mxu0 0.0
        %453 = vmatprep.subr.mxu0 0.0
        %454 = vmatpush1.msra.mxu0 0.0
        %455 = vmatprep.subr.mxu0 0.0
        %456 = vmatpush1.msra.mxu0 0.0
        %457 = vmatprep.subr.mxu0 0.0
        %458 = vmatpush1.msra.mxu0 0.0
        %459 = vmatprep.subr.mxu0 0.0
        %460 = vmatpush1.msra.mxu0 0.0
        %461 = vmatprep.subr.mxu0 0.0
        %462 = vmatpush1.msra.mxu0 0.0
        %463 = vmatprep.subr.mxu0 0.0
        %464 = vmatpush1.msra.mxu0 0.0
        %465 = vmatprep.subr.mxu0 0.0
        %466 = vmatpush1.msra.mxu0 0.0
        %467 = vmatprep.subr.mxu0 0.0
        %468 = vmatpush1.msra.mxu0 0.0
        %469 = vmatprep.subr.mxu0 0.0
        %470 = vmatpush1.msra.mxu0 0.0
        %471 = vmatprep.subr.mxu0 0.0
        %472 = vmatpush1.msra.mxu0 0.0
        %473 = vmatprep.subr.mxu0 0.0
        %474 = vmatpush1.msra.mxu0 0.0
        %475 = vmatprep.subr.mxu0 0.0
        %476 = vmatpush1.msra.mxu0 0.0
        %477 = vmatprep.subr.mxu0 0.0
        %478 = vmatpush1.msra.mxu0 0.0
        %479 = vmatprep.subr.mxu0 0.0
        %480 = vmatpush1.msra.mxu0 0.0
        %481 = vmatprep.subr.mxu0 0.0
        %482 = vmatpush1.msra.mxu0 0.0
        %483 = vmatprep.subr.mxu0 0.0
        %484 = vmatpush1.msra.mxu0 0.0
        %485 = vmatprep.subr.mxu0 0.0
        %486 = vmatpush1.msra.mxu0 0.0
        %487 = vmatprep.subr.mxu0 0.0
        %488 = vmatpush1.msra.mxu0 0.0
        %489 = vmatprep.subr.mxu0 0.0
        %490 = vmatpush1.msra.mxu0 0.0
        %491 = vmatprep.subr.mxu0 0.0
        %492 = vmatpush1.msra.mxu0 0.0
        %493 = vmatprep.subr.mxu0 0.0
        %494 = vmatpush1.msra.mxu0 0.0
        %495 = vmatprep.subr.mxu0 0.0
        %496 = vmatpush1.msra.mxu0 0.0
        %497 = vmatprep.subr.mxu0 0.0
        %498 = vmatpush1.msra.mxu0 0.0
        %499 = vmatprep.subr.mxu0 0.0
        %500 = vmatpush1.msra.mxu0 0.0
        %501 = vmatprep.subr.mxu0 0.0
        %502 = vmatpush1.msra.mxu0 0.0
        %503 = vmatprep.mubr.f32.mxu0 0.0
        %504 = vmatmul.mubr.f32.gmra.mrb[0].mxu0 %v431
        %v505 = vpop.f32.mrb[0].mxu0
        %v506 = vadd.f32 %v428, %v505
        %v507 = vpop.f32.mrb[0].mxu0
        %v508 = vadd.f32 %v428, %v507
        %509 = vdwg.mxu0
        %v510 = vxor.u32 %v506, 2147483648
        %v511 = vxor.u32 %v508, 2147483648
        %v512 = vmul.f32 %v510, 1.442695
        %v513 = vpow.pop %v512
        %v514 = vmul.f32 %v511, 1.442695
        %v515 = vpow.pop %v514
        %v516 = vadd.f32 %v513, 1.0
        %v517 = vadd.f32 %v515, 1.0
        %v518 = vrcp.pop %v516
        %v519 = vmul.f32 1.0, %v518
        %v520 = vrcp.pop %v517
        %v521 = vmul.f32 1.0, %v520
        %v522 = vld [vmem:[%s285] sm:$0xff]
        %v525 = vcombine.low %v519, %v521
        %v527 = vmul.f32 %v522, %v525
        %528 = vst [vmem:[%s327] sm:$0xff] %v527
        %s529 = sand.u32 %s188, 1
        %s530 = scalar_lea.sflag [#allocation4], %s529
        %s531 = sand.u32 %s188, 1
        %s532 = smul.addr %s531, 8
        %s533 = scalar_lea.vmem [#allocation7], %s532
        // Predicated region
        $region53: #{tpu_custom_call.1} parent=43 // pred_check
          %p534 = pneg %p198
        $region54: #{tpu_custom_call.1} parent=43 // pred_check_branch
          %536 = sbr.rel (%p534) target = $region56
        $region55: #{tpu_custom_call.1} parent=43 // pred_region
          %s537 = smul.u32 2, %s31
          %s539 = ssub.s32 128, 128
          %540 = vsyncadd %s530, %s539
          %s541 = smul.addr %s30, 2
          %s542 = sadd.s32 %s537, %s541
          %s543 = smul.addr %s542, 64
          %s544 = scalar_lea.hbm %s6, %s543
          %s546 = sshll.u32 %s533, 4
          %s547 = int_to_ptr.vmem [resolvable:$true] %s546
          %549 = dma.vmem_to_hbm [thread:$0]  %s547, 128, %s544, %s530
        $region56: #{tpu_custom_call.1} parent=43 // pred_fallthru
          _
      $region44: #{tpu_custom_call.1} parent=5 // pred_fallthru
        _
      %p550 = scmp.le.s32.totalorder 2, %s21
      // Predicated region
      $region57: #{tpu_custom_call.1} parent=5 // pred_check
        %p551 = pneg %p550
      $region58: #{tpu_custom_call.1} parent=5 // pred_check_branch
        %553 = sbr.rel (%p551) target = $region60
      $region59: #{tpu_custom_call.1} parent=5 // pred_region
        %s554 = ssub.s32 %s21, 2
        // Predicated region
        $region61: #{tpu_custom_call.1} parent=59 // pred_check
          %p555 = pneg %p204
        $region62: #{tpu_custom_call.1} parent=59 // pred_check_branch
          %557 = sbr.rel (%p555) target = $region64
        $region63: #{tpu_custom_call.1} parent=59 // pred_region
          %s558 = sand.u32 %s189, 1
          %s559 = scalar_lea.sflag [#allocation4], %s558
          %s560 = sand.u32 %s189, 1
          %s561 = smul.addr %s560, 8
          %s562 = scalar_lea.vmem [#allocation7], %s561
          %563 = dma.done %s559, 128
        $region64: #{tpu_custom_call.1} parent=59 // pred_fallthru
          _
      $region60: #{tpu_custom_call.1} parent=5 // pred_fallthru
        _
    $region6: #{tpu_custom_call.1} parent=1 // loop_footer
      %s25 = sadd.s32 1, %s21
    $region7: #{tpu_custom_call.1} parent=1 // loop_footer_branch
      %20 = sbr.rel target = $region3
    $region8: #{tpu_custom_call.1} parent=1 // loop_exit
      _
    %564 = vsyncpa [#allocation3], 1
    %s565 = scalar_lea.sflag [#allocation3], 1
    %566 = vsyncpa %s565, 1
    %567 = vsyncpa [#allocation6], 1
    %s568 = scalar_lea.sflag [#allocation6], 1
    %569 = vsyncpa %s568, 1
    %570 = vsyncpa [#allocation4], 1
    %s571 = scalar_lea.sflag [#allocation4], 1
    %572 = vsyncpa %s571, 1

// kernel: tpu_custom_call.1
$region0: #{tpu_custom_call.1}
  #allocation0 [shape = 'u32[]', space=smem, size = 0x4, offset = 0x4, fixed_abs, tag = 'smem constant byte address 0x4 - core index']
  #allocation1 [shape = 'u32[144,128]{1,0:T(1,128)}', space=vmem, size = 0x12000, scoped, tag = 'internal scratch']
  %s0 = inlined_call_operand.hbm [shape: f32[2,4,256], index: 0, kind: input, shape index: {}]
  %s1 = inlined_call_operand.hbm [shape: f32[2,4,256], index: 1, kind: input, shape index: {}]
  %s2 = inlined_call_operand.vmem [shape: f32[4,4], index: 2, kind: input, shape index: {}]
  %s3 = inlined_call_operand.vmem [shape: f32[4,1], index: 3, kind: input, shape index: {}]
  %s4 = inlined_call_operand.vmem [shape: f32[4,4], index: 4, kind: input, shape index: {}]
  %s5 = inlined_call_operand.vmem [shape: f32[4,1], index: 5, kind: input, shape index: {}]
  %s6 = inlined_call_operand.hbm [shape: f32[2,4,256], index: 6, kind: output, shape index: {}]
  %s7 = sld [smem:[#allocation0]]
  $region65: #{tpu_custom_call.1} parent=0
    _
  %s9 = ssub.s32 1, %s7
  %s10 = scalar_select 0, %s9, %s7
  $region1: #{tpu_custom_call.1} parent=0
    #allocation2 [shape = 'u8[8192]{0}', space=vmem, size = 0x2000, scoped, tag = 'input window, operand 0']
    #allocation3 [shape = 's32[2]{0}', space=sflag, size = 0x8, scoped, tag = 'scoped memory for tpu_custom_call.1']
    #allocation4 [shape = 's32[2]{0}', space=sflag, size = 0x8, scoped, tag = 'scoped memory for tpu_custom_call.1']
    #allocation5 [shape = 'u8[8192]{0}', space=vmem, size = 0x2000, scoped, tag = 'input window, operand 1']
    #allocation6 [shape = 's32[2]{0}', space=sflag, size = 0x8, scoped, tag = 'scoped memory for tpu_custom_call.1']
    #allocation7 [shape = 'u8[8192]{0}', space=vmem, size = 0x2000, scoped, tag = 'output window, operand 0']
    %11 = vsyncpa [#allocation3], 0
    %s12 = scalar_lea.sflag [#allocation3], 1
    %13 = vsyncpa %s12, 0
    %14 = vsyncpa [#allocation6], 0
    %s15 = scalar_lea.sflag [#allocation6], 1
    %16 = vsyncpa %s15, 0
    %17 = vsyncpa [#allocation4], 0
    %s18 = scalar_lea.sflag [#allocation4], 1
    %19 = vsyncpa %s18, 0
    loop: start=0, step=1, limit=4
    $region2: #{tpu_custom_call.1} parent=1 // loop_pre_header
      _
    $region3: #{tpu_custom_call.1} parent=1 // loop_header
      %s21 = sphi 0, %s25
      %p22 = scmp.ge.s32.totalorder %s21, 4
      %s28 = sphi 0, %s40
      %s29 = sphi 0, %s36
      %s30 = sphi 0, %s28
      %s31 = sphi 0, %s29
      %s32 = sphi 0, %s30
      %s33 = sphi 0, %s31
      %s45 = sphi 0, %s47
      %s48 = sphi 0, %s45
      %s49 = sphi 0, %s48
      %s65 = sphi 0, %s49
      %s73 = sphi 0, %s75
      %s76 = sphi 0, %s73
      %s77 = sphi 0, %s76
      %s93 = sphi 0, %s77
      %s97 = sphi 0, %s97
      %s99 = sphi 0, %s97
      %s100 = sphi 0, %s99
      %s114 = sphi 0, %s100
      %s118 = sphi 0, %s118
      %s120 = sphi 0, %s118
      %s121 = sphi 0, %s120
      %s135 = sphi 0, %s121
      %s139 = sphi 0, %s139
      %s141 = sphi 0, %s139
      %s142 = sphi 0, %s141
      %s156 = sphi 0, %s142
      %s160 = sphi 0, %s160
      %s162 = sphi 0, %s160
      %s163 = sphi 0, %s162
      %s177 = sphi 0, %s163
      %s185 = sphi 0, %s187
      %s188 = sphi 0, %s185
      %s189 = sphi 0, %s188
      %s205 = sphi 0, %s189
    $region4: #{tpu_custom_call.1} parent=1 // loop_header_branch
      %24 = sbr.rel (%p22) target = $region8
    $region5: #{tpu_custom_call.1} parent=1 // loop_body
      %s26 = ssub.s32 %s21, 1
      %s27 = ssub.s32 %s21, 2
      %s34 = sadd.s32 1, %s29
      %p35 = scmp.ge.s32.totalorder %s34, 1
      %s36 = scalar_select %p35, 0, %s34
      %s37 = sadd.s32 1, %s28
      %s38 = scalar_select %p35, %s37, %s28
      %p39 = scmp.ge.s32.totalorder %s38, 2
      %s40 = scalar_select %p39, 0, %s38
      %s41 = ssub.s32 %s28, %s40
      %s42 = ssub.s32 %s29, %s36
      %s43 = sor.u32 %s41, %s42
      %p44 = scmp.eq.s32.totalorder %s43, 0
      %s46 = sadd.s32 %s45, 1
      %s47 = scalar_select %p44, %s45, %s46
      %p50 = pneg %p44
      %p51 = scmp.eq.s32.totalorder %s21, 1
      %p52 = por %p50, %p51
      %p53 = scmp.ne.s32.totalorder %s45, %s48
      %p54 = scmp.eq.s32.totalorder %s21, 0
      %p55 = por %p53, %p54
      %p56 = scmp.ne.s32.totalorder %s45, %s48
      %p57 = scmp.eq.s32.totalorder %s26, 1
      %p58 = por %p56, %p57
      %p59 = scmp.ne.s32.totalorder %s48, %s49
      %p60 = scmp.eq.s32.totalorder %s26, 0
      %p61 = por %p59, %p60
      %p62 = scmp.ne.s32.totalorder %s48, %s49
      %p63 = scmp.eq.s32.totalorder %s27, 1
      %p64 = por %p62, %p63
      %p66 = scmp.ne.s32.totalorder %s49, %s65
      %p67 = scmp.eq.s32.totalorder %s27, 0
      %p68 = por %p66, %p67
      %s69 = ssub.s32 %s28, %s40
      %s70 = ssub.s32 %s29, %s36
      %s71 = sor.u32 %s69, %s70
      %p72 = scmp.eq.s32.totalorder %s71, 0
      %s74 = sadd.s32 %s73, 1
      %s75 = scalar_select %p72, %s73, %s74
      %p78 = pneg %p72
      %p79 = scmp.eq.s32.totalorder %s21, 1
      %p80 = por %p78, %p79
      %p81 = scmp.ne.s32.totalorder %s73, %s76
      %p82 = scmp.eq.s32.totalorder %s21, 0
      %p83 = por %p81, %p82
      %p84 = scmp.ne.s32.totalorder %s73, %s76
      %p85 = scmp.eq.s32.totalorder %s26, 1
      %p86 = por %p84, %p85
      %p87 = scmp.ne.s32.totalorder %s76, %s77
      %p88 = scmp.eq.s32.totalorder %s26, 0
      %p89 = por %p87, %p88
      %p90 = scmp.ne.s32.totalorder %s76, %s77
      %p91 = scmp.eq.s32.totalorder %s27, 1
      %p92 = por %p90, %p91
      %p94 = scmp.ne.s32.totalorder %s77, %s93
      %p95 = scmp.eq.s32.totalorder %s27, 0
      %p96 = por %p94, %p95
      %s98 = sadd.s32 %s97, 1
      %p101 = scmp.eq.s32.totalorder %s21, 1
      %p102 = scmp.ne.s32.totalorder %s97, %s99
      %p103 = scmp.eq.s32.totalorder %s21, 0
      %p104 = por %p102, %p103
      %p105 = scmp.ne.s32.totalorder %s97, %s99
      %p106 = scmp.eq.s32.totalorder %s26, 1
      %p107 = por %p105, %p106
      %p108 = scmp.ne.s32.totalorder %s99, %s100
      %p109 = scmp.eq.s32.totalorder %s26, 0
      %p110 = por %p108, %p109
      %p111 = scmp.ne.s32.totalorder %s99, %s100
      %p112 = scmp.eq.s32.totalorder %s27, 1
      %p113 = por %p111, %p112
      %p115 = scmp.ne.s32.totalorder %s100, %s114
      %p116 = scmp.eq.s32.totalorder %s27, 0
      %p117 = por %p115, %p116
      %s119 = sadd.s32 %s118, 1
      %p122 = scmp.eq.s32.totalorder %s21, 1
      %p123 = scmp.ne.s32.totalorder %s118, %s120
      %p124 = scmp.eq.s32.totalorder %s21, 0
      %p125 = por %p123, %p124
      %p126 = scmp.ne.s32.totalorder %s118, %s120
      %p127 = scmp.eq.s32.totalorder %s26, 1
      %p128 = por %p126, %p127
      %p129 = scmp.ne.s32.totalorder %s120, %s121
      %p130 = scmp.eq.s32.totalorder %s26, 0
      %p131 = por %p129, %p130
      %p132 = scmp.ne.s32.totalorder %s120, %s121
      %p133 = scmp.eq.s32.totalorder %s27, 1
      %p134 = por %p132, %p133
      %p136 = scmp.ne.s32.totalorder %s121, %s135
      %p137 = scmp.eq.s32.totalorder %s27, 0
      %p138 = por %p136, %p137
      %s140 = sadd.s32 %s139, 1
      %p143 = scmp.eq.s32.totalorder %s21, 1
      %p144 = scmp.ne.s32.totalorder %s139, %s141
      %p145 = scmp.eq.s32.totalorder %s21, 0
      %p146 = por %p144, %p145
      %p147 = scmp.ne.s32.totalorder %s139, %s141
      %p148 = scmp.eq.s32.totalorder %s26, 1
      %p149 = por %p147, %p148
      %p150 = scmp.ne.s32.totalorder %s141, %s142
      %p151 = scmp.eq.s32.totalorder %s26, 0
      %p152 = por %p150, %p151
      %p153 = scmp.ne.s32.totalorder %s141, %s142
      %p154 = scmp.eq.s32.totalorder %s27, 1
      %p155 = por %p153, %p154
      %p157 = scmp.ne.s32.totalorder %s142, %s156
      %p158 = scmp.eq.s32.totalorder %s27, 0
      %p159 = por %p157, %p158
      %s161 = sadd.s32 %s160, 1
      %p164 = scmp.eq.s32.totalorder %s21, 1
      %p165 = scmp.ne.s32.totalorder %s160, %s162
      %p166 = scmp.eq.s32.totalorder %s21, 0
      %p167 = por %p165, %p166
      %p168 = scmp.ne.s32.totalorder %s160, %s162
      %p169 = scmp.eq.s32.totalorder %s26, 1
      %p170 = por %p168, %p169
      %p171 = scmp.ne.s32.totalorder %s162, %s163
      %p172 = scmp.eq.s32.totalorder %s26, 0
      %p173 = por %p171, %p172
      %p174 = scmp.ne.s32.totalorder %s162, %s163
      %p175 = scmp.eq.s32.totalorder %s27, 1
      %p176 = por %p174, %p175
      %p178 = scmp.ne.s32.totalorder %s163, %s177
      %p179 = scmp.eq.s32.totalorder %s27, 0
      %p180 = por %p178, %p179
      %s181 = ssub.s32 %s28, %s40
      %s182 = ssub.s32 %s29, %s36
      %s183 = sor.u32 %s181, %s182
      %p184 = scmp.eq.s32.totalorder %s183, 0
      %s186 = sadd.s32 %s185, 1
      %s187 = scalar_select %p184, %s185, %s186
      %p190 = pneg %p184
      %p191 = scmp.eq.s32.totalorder %s21, 1
      %p192 = por %p190, %p191
      %p193 = scmp.ne.s32.totalorder %s185, %s188
      %p194 = scmp.eq.s32.totalorder %s21, 0
      %p195 = por %p193, %p194
      %p196 = scmp.ne.s32.totalorder %s185, %s188
      %p197 = scmp.eq.s32.totalorder %s26, 1
      %p198 = por %p196, %p197
      %p199 = scmp.ne.s32.totalorder %s188, %s189
      %p200 = scmp.eq.s32.totalorder %s26, 0
      %p201 = por %p199, %p200
      %p202 = scmp.ne.s32.totalorder %s188, %s189
      %p203 = scmp.eq.s32.totalorder %s27, 1
      %p204 = por %p202, %p203
      %p206 = scmp.ne.s32.totalorder %s189, %s205
      %p207 = scmp.eq.s32.totalorder %s27, 0
      %p208 = por %p206, %p207
      %p209 = scmp.le.s32.totalorder 1, %s21
      %p210 = scmp.lt.s32.totalorder %s21, 3
      %p211 = pnand %p209, %p210
      %p212 = pneg %p211
      // Predicated region
      $region9: #{tpu_custom_call.1} parent=5 // pred_check
        _
      $region10: #{tpu_custom_call.1} parent=5 // pred_check_branch
        %214 = sbr.rel (%p211) target = $region12
      $region11: #{tpu_custom_call.1} parent=5 // pred_region
        %s215 = ssub.s32 %s21, 1
        // Predicated region
        $region13: #{tpu_custom_call.1} parent=11 // pred_check
          %p216 = pneg %p110
        $region14: #{tpu_custom_call.1} parent=11 // pred_check_branch
          %218 = sbr.rel (%p216) target = $region16
        $region15: #{tpu_custom_call.1} parent=11 // pred_region
          _
        $region16: #{tpu_custom_call.1} parent=11 // pred_fallthru
          _
        // Predicated region
        $region17: #{tpu_custom_call.1} parent=11 // pred_check
          %p219 = pneg %p131
        $region18: #{tpu_custom_call.1} parent=11 // pred_check_branch
          %221 = sbr.rel (%p219) target = $region20
        $region19: #{tpu_custom_call.1} parent=11 // pred_region
          _
        $region20: #{tpu_custom_call.1} parent=11 // pred_fallthru
          _
        // Predicated region
        $region21: #{tpu_custom_call.1} parent=11 // pred_check
          %p222 = pneg %p152
        $region22: #{tpu_custom_call.1} parent=11 // pred_check_branch
          %224 = sbr.rel (%p222) target = $region24
        $region23: #{tpu_custom_call.1} parent=11 // pred_region
          _
        $region24: #{tpu_custom_call.1} parent=11 // pred_fallthru
          _
        // Predicated region
        $region25: #{tpu_custom_call.1} parent=11 // pred_check
          %p225 = pneg %p173
        $region26: #{tpu_custom_call.1} parent=11 // pred_check_branch
          %227 = sbr.rel (%p225) target = $region28
        $region27: #{tpu_custom_call.1} parent=11 // pred_region
          _
        $region28: #{tpu_custom_call.1} parent=11 // pred_fallthru
          _
      $region12: #{tpu_custom_call.1} parent=5 // pred_fallthru
        _
      %p228 = scmp.lt.s32.totalorder %s21, 2
      // Predicated region
      $region29: #{tpu_custom_call.1} parent=5 // pred_check
        %p229 = pneg %p228
      $region30: #{tpu_custom_call.1} parent=5 // pred_check_branch
        %231 = sbr.rel (%p229) target = $region32
      $region31: #{tpu_custom_call.1} parent=5 // pred_region
        // Predicated region
        $region33: #{tpu_custom_call.1} parent=31 // pred_check
          %p232 = pneg %p55
        $region34: #{tpu_custom_call.1} parent=31 // pred_check_branch
          %234 = sbr.rel (%p232) target = $region36
        $region35: #{tpu_custom_call.1} parent=31 // pred_region
          %s235 = sand.u32 %s45, 1
          %s236 = scalar_lea.sflag [#allocation3], %s235
          %s237 = sand.u32 %s45, 1
          %s238 = smul.addr %s237, 8
          %s239 = scalar_lea.vmem [#allocation2], %s238
          %s240 = smul.u32 2, %s29
          %s242 = ssub.s32 128, 128
          %243 = vsyncadd %s236, %s242
          %s244 = smul.addr %s28, 2
          %s245 = sadd.s32 %s240, %s244
          %s246 = smul.addr %s245, 64
          %s247 = scalar_lea.hbm %s0, %s246
          %s249 = sshll.u32 %s239, 4
          %s250 = int_to_ptr.vmem [resolvable:$true] %s249
          %252 = dma.hbm_to_vmem [thread:$0]  %s247, 128, %s250, %s236
        $region36: #{tpu_custom_call.1} parent=31 // pred_fallthru
          _
        // Predicated region
        $region37: #{tpu_custom_call.1} parent=31 // pred_check
          %p253 = pneg %p83
        $region38: #{tpu_custom_call.1} parent=31 // pred_check_branch
          %255 = sbr.rel (%p253) target = $region40
        $region39: #{tpu_custom_call.1} parent=31 // pred_region
          %s256 = sand.u32 %s73, 1
          %s257 = scalar_lea.sflag [#allocation6], %s256
          %s258 = sand.u32 %s73, 1
          %s259 = smul.addr %s258, 8
          %s260 = scalar_lea.vmem [#allocation5], %s259
          %s261 = smul.u32 2, %s29
          %s263 = ssub.s32 128, 128
          %264 = vsyncadd %s257, %s263
          %s265 = smul.addr %s28, 2
          %s266 = sadd.s32 %s261, %s265
          %s267 = smul.addr %s266, 64
          %s268 = scalar_lea.hbm %s1, %s267
          %s270 = sshll.u32 %s260, 4
          %s271 = int_to_ptr.vmem [resolvable:$true] %s270
          %273 = dma.hbm_to_vmem [thread:$0]  %s268, 128, %s271, %s257
        $region40: #{tpu_custom_call.1} parent=31 // pred_fallthru
          _
      $region32: #{tpu_custom_call.1} parent=5 // pred_fallthru
        _
      %p274 = scmp.le.s32.totalorder 1, %s21
      %p275 = scmp.lt.s32.totalorder %s21, 3
      %p276 = pnand %p274, %p275
      %p277 = pneg %p276
      // Predicated region
      $region41: #{tpu_custom_call.1} parent=5 // pred_check
        _
      $region42: #{tpu_custom_call.1} parent=5 // pred_check_branch
        %279 = sbr.rel (%p276) target = $region44
      $region43: #{tpu_custom_call.1} parent=5 // pred_region
        %s280 = ssub.s32 %s21, 1
        %s281 = sand.u32 %s48, 1
        %s282 = scalar_lea.sflag [#allocation3], %s281
        %s283 = sand.u32 %s48, 1
        %s284 = smul.addr %s283, 8
        %s285 = scalar_lea.vmem [#allocation2], %s284
        // Predicated region
        $region45: #{tpu_custom_call.1} parent=43 // pred_check
          %p286 = pneg %p61
        $region46: #{tpu_custom_call.1} parent=43 // pred_check_branch
          %288 = sbr.rel (%p286) target = $region48
        $region47: #{tpu_custom_call.1} parent=43 // pred_region
          %289 = dma.done %s282, 128
        $region48: #{tpu_custom_call.1} parent=43 // pred_fallthru
          _
        %s290 = sand.u32 %s76, 1
        %s291 = scalar_lea.sflag [#allocation6], %s290
        %s292 = sand.u32 %s76, 1
        %s293 = smul.addr %s292, 8
        %s294 = scalar_lea.vmem [#allocation5], %s293
        // Predicated region
        $region49: #{tpu_custom_call.1} parent=43 // pred_check
          %p295 = pneg %p89
        $region50: #{tpu_custom_call.1} parent=43 // pred_check_branch
          %297 = sbr.rel (%p295) target = $region52
        $region51: #{tpu_custom_call.1} parent=43 // pred_region
          %298 = dma.done %s291, 128
        $region52: #{tpu_custom_call.1} parent=43 // pred_fallthru
          _
        %s299 = sand.u32 %s48, 1
        %s300 = scalar_lea.sflag [#allocation3], %s299
        %s301 = sand.u32 %s48, 1
        %s302 = smul.addr %s301, 8
        %s303 = scalar_lea.vmem [#allocation2], %s302
        %p304 = pneg %p61
        %p305 = pneg %p58
        %s306 = sand.u32 %s76, 1
        %s307 = scalar_lea.sflag [#allocation6], %s306
        %s308 = sand.u32 %s76, 1
        %s309 = smul.addr %s308, 8
        %s310 = scalar_lea.vmem [#allocation5], %s309
        %p311 = pneg %p89
        %p312 = pneg %p86
        %p313 = pneg %p110
        %p314 = pneg %p107
        %p315 = pneg %p131
        %p316 = pneg %p128
        %p317 = pneg %p152
        %p318 = pneg %p149
        %p319 = pneg %p173
        %p320 = pneg %p170
        %p321 = pneg %p201
        %p322 = pneg %p198
        %s323 = sand.u32 %s188, 1
        %s324 = scalar_lea.sflag [#allocation4], %s323
        %s325 = sand.u32 %s188, 1
        %s326 = smul.addr %s325, 8
        %s327 = scalar_lea.vmem [#allocation7], %s326
        %s328 = smul.u32 2, %s31
        %s329 = smul.u32 2, %s31
        %s330 = smul.u32 2, %s31
        %v331 = vld [vmem:[%s294] sm:$0xff]
        %v332 = vld [vmem:[%s2] sm:$0xf]
        %v333 = vld [vmem:[%s3] sm:$0xf]
        %335 = vset.pattern.permute.xlu0 0
        %336 = vperm.xlu0 %335, %v333
        %v337 = vpop.permute.xlu0 %336
        %v340 = vcombine.high %v331, %v331
        %vm341 = vcmask 31744
        %v343 = vsel %vm341, %v332, 0
        %vm345 = vcmask 1043456
        %v346 = vsel %vm345, %v331, 0
        %v348 = vsel %vm345, %v340, 0
        %350 = vmatprep.subr.mxu0 %v348
        %351 = vmatpush1.msra.mxu0 %v346
        %352 = vmatprep.subr.mxu0 0.0
        %353 = vmatpush1.msra.mxu0 0.0
        %354 = vmatprep.subr.mxu0 0.0
        %355 = vmatpush1.msra.mxu0 0.0
        %356 = vmatprep.subr.mxu0 0.0
        %357 = vmatpush1.msra.mxu0 0.0
        %358 = vmatprep.subr.mxu0 0.0
        %359 = vmatpush1.msra.mxu0 0.0
        %360 = vmatprep.subr.mxu0 0.0
        %361 = vmatpush1.msra.mxu0 0.0
        %362 = vmatprep.subr.mxu0 0.0
        %363 = vmatpush1.msra.mxu0 0.0
        %364 = vmatprep.subr.mxu0 0.0
        %365 = vmatpush1.msra.mxu0 0.0
        %366 = vmatprep.subr.mxu0 0.0
        %367 = vmatpush1.msra.mxu0 0.0
        %368 = vmatprep.subr.mxu0 0.0
        %369 = vmatpush1.msra.mxu0 0.0
        %370 = vmatprep.subr.mxu0 0.0
        %371 = vmatpush1.msra.mxu0 0.0
        %372 = vmatprep.subr.mxu0 0.0
        %373 = vmatpush1.msra.mxu0 0.0
        %374 = vmatprep.subr.mxu0 0.0
        %375 = vmatpush1.msra.mxu0 0.0
        %376 = vmatprep.subr.mxu0 0.0
        %377 = vmatpush1.msra.mxu0 0.0
        %378 = vmatprep.subr.mxu0 0.0
        %379 = vmatpush1.msra.mxu0 0.0
        %380 = vmatprep.subr.mxu0 0.0
        %381 = vmatpush1.msra.mxu0 0.0
        %382 = vmatprep.subr.mxu0 0.0
        %383 = vmatpush1.msra.mxu0 0.0
        %384 = vmatprep.subr.mxu0 0.0
        %385 = vmatpush1.msra.mxu0 0.0
        %386 = vmatprep.subr.mxu0 0.0
        %387 = vmatpush1.msra.mxu0 0.0
        %388 = vmatprep.subr.mxu0 0.0
        %389 = vmatpush1.msra.mxu0 0.0
        %390 = vmatprep.subr.mxu0 0.0
        %391 = vmatpush1.msra.mxu0 0.0
        %392 = vmatprep.subr.mxu0 0.0
        %393 = vmatpush1.msra.mxu0 0.0
        %394 = vmatprep.subr.mxu0 0.0
        %395 = vmatpush1.msra.mxu0 0.0
        %396 = vmatprep.subr.mxu0 0.0
        %397 = vmatpush1.msra.mxu0 0.0
        %398 = vmatprep.subr.mxu0 0.0
        %399 = vmatpush1.msra.mxu0 0.0
        %400 = vmatprep.subr.mxu0 0.0
        %401 = vmatpush1.msra.mxu0 0.0
        %402 = vmatprep.subr.mxu0 0.0
        %403 = vmatpush1.msra.mxu0 0.0
        %404 = vmatprep.subr.mxu0 0.0
        %405 = vmatpush1.msra.mxu0 0.0
        %406 = vmatprep.subr.mxu0 0.0
        %407 = vmatpush1.msra.mxu0 0.0
        %408 = vmatprep.subr.mxu0 0.0
        %409 = vmatpush1.msra.mxu0 0.0
        %410 = vmatprep.subr.mxu0 0.0
        %411 = vmatpush1.msra.mxu0 0.0
        %412 = vmatprep.subr.mxu0 0.0
        %413 = vmatpush1.msra.mxu0 0.0
        %414 = vmatprep.mubr.f32.mxu0 0.0
        %415 = vmatmul.mubr.f32.gmra.mrb[0].mxu0 %v343
        %v416 = vpop.f32.mrb[0].mxu0
        %v417 = vadd.f32 %v337, %v416
        %v418 = vpop.f32.mrb[0].mxu0
        %v419 = vadd.f32 %v337, %v418
        %420 = vdwg.mxu0
        %v421 = vmax.f32 %v417, 0.0
        %v422 = vmax.f32 %v419, 0.0
        %v423 = vld [vmem:[%s4] sm:$0xf]
        %v424 = vld [vmem:[%s5] sm:$0xf]
        %426 = vset.pattern.permute.xlu0 0
        %427 = vperm.xlu0 %426, %v424
        %v428 = vpop.permute.xlu0 %427
        %v431 = vsel %vm341, %v423, 0
        %v434 = vsel %vm345, %v421, 0
        %v437 = vsel %vm345, %v422, 0
        %439 = vmatprep.subr.mxu0 %v437
        %440 = vmatpush1.msra.mxu0 %v434
        %441 = vmatprep.subr.mxu0 0.0
        %442 = vmatpush1.msra.mxu0 0.0
        %443 = vmatprep.subr.mxu0 0.0
        %444 = vmatpush1.msra.mxu0 0.0
        %445 = vmatprep.subr.mxu0 0.0
        %446 = vmatpush1.msra.mxu0 0.0
        %447 = vmatprep.subr.mxu0 0.0
        %448 = vmatpush1.msra.mxu0 0.0
        %449 = vmatprep.subr.mxu0 0.0
        %450 = vmatpush1.msra.mxu0 0.0
        %451 = vmatprep.subr.mxu0 0.0
        %452 = vmatpush1.msra.mxu0 0.0
        %453 = vmatprep.subr.mxu0 0.0
        %454 = vmatpush1.msra.mxu0 0.0
        %455 = vmatprep.subr.mxu0 0.0
        %456 = vmatpush1.msra.mxu0 0.0
        %457 = vmatprep.subr.mxu0 0.0
        %458 = vmatpush1.msra.mxu0 0.0
        %459 = vmatprep.subr.mxu0 0.0
        %460 = vmatpush1.msra.mxu0 0.0
        %461 = vmatprep.subr.mxu0 0.0
        %462 = vmatpush1.msra.mxu0 0.0
        %463 = vmatprep.subr.mxu0 0.0
        %464 = vmatpush1.msra.mxu0 0.0
        %465 = vmatprep.subr.mxu0 0.0
        %466 = vmatpush1.msra.mxu0 0.0
        %467 = vmatprep.subr.mxu0 0.0
        %468 = vmatpush1.msra.mxu0 0.0
        %469 = vmatprep.subr.mxu0 0.0
        %470 = vmatpush1.msra.mxu0 0.0
        %471 = vmatprep.subr.mxu0 0.0
        %472 = vmatpush1.msra.mxu0 0.0
        %473 = vmatprep.subr.mxu0 0.0
        %474 = vmatpush1.msra.mxu0 0.0
        %475 = vmatprep.subr.mxu0 0.0
        %476 = vmatpush1.msra.mxu0 0.0
        %477 = vmatprep.subr.mxu0 0.0
        %478 = vmatpush1.msra.mxu0 0.0
        %479 = vmatprep.subr.mxu0 0.0
        %480 = vmatpush1.msra.mxu0 0.0
        %481 = vmatprep.subr.mxu0 0.0
        %482 = vmatpush1.msra.mxu0 0.0
        %483 = vmatprep.subr.mxu0 0.0
        %484 = vmatpush1.msra.mxu0 0.0
        %485 = vmatprep.subr.mxu0 0.0
        %486 = vmatpush1.msra.mxu0 0.0
        %487 = vmatprep.subr.mxu0 0.0
        %488 = vmatpush1.msra.mxu0 0.0
        %489 = vmatprep.subr.mxu0 0.0
        %490 = vmatpush1.msra.mxu0 0.0
        %491 = vmatprep.subr.mxu0 0.0
        %492 = vmatpush1.msra.mxu0 0.0
        %493 = vmatprep.subr.mxu0 0.0
        %494 = vmatpush1.msra.mxu0 0.0
        %495 = vmatprep.subr.mxu0 0.0
        %496 = vmatpush1.msra.mxu0 0.0
        %497 = vmatprep.subr.mxu0 0.0
        %498 = vmatpush1.msra.mxu0 0.0
        %499 = vmatprep.subr.mxu0 0.0
        %500 = vmatpush1.msra.mxu0 0.0
        %501 = vmatprep.subr.mxu0 0.0
        %502 = vmatpush1.msra.mxu0 0.0
        %503 = vmatprep.mubr.f32.mxu0 0.0
        %504 = vmatmul.mubr.f32.gmra.mrb[0].mxu0 %v431
        %v505 = vpop.f32.mrb[0].mxu0
        %v506 = vadd.f32 %v428, %v505
        %v507 = vpop.f32.mrb[0].mxu0
        %v508 = vadd.f32 %v428, %v507
        %509 = vdwg.mxu0
        %v510 = vxor.u32 %v506, 2147483648
        %v511 = vxor.u32 %v508, 2147483648
        %v512 = vmul.f32 %v510, 1.442695
        %v513 = vpow.pop %v512
        %v514 = vmul.f32 %v511, 1.442695
        %v515 = vpow.pop %v514
        %v516 = vadd.f32 %v513, 1.0
        %v517 = vadd.f32 %v515, 1.0
        %v518 = vrcp.pop %v516
        %v519 = vmul.f32 1.0, %v518
        %v520 = vrcp.pop %v517
        %v521 = vmul.f32 1.0, %v520
        %v522 = vld [vmem:[%s285] sm:$0xff]
        %v525 = vcombine.low %v519, %v521
        %v527 = vmul.f32 %v522, %v525
        %528 = vst [vmem:[%s327] sm:$0xff] %v527
        %s529 = sand.u32 %s188, 1
        %s530 = scalar_lea.sflag [#allocation4], %s529
        %s531 = sand.u32 %s188, 1
        %s532 = smul.addr %s531, 8
        %s533 = scalar_lea.vmem [#allocation7], %s532
        // Predicated region
        $region53: #{tpu_custom_call.1} parent=43 // pred_check
          %p534 = pneg %p198
        $region54: #{tpu_custom_call.1} parent=43 // pred_check_branch
          %536 = sbr.rel (%p534) target = $region56
        $region55: #{tpu_custom_call.1} parent=43 // pred_region
          %s537 = smul.u32 2, %s31
          %s539 = ssub.s32 128, 128
          %540 = vsyncadd %s530, %s539
          %s541 = smul.addr %s30, 2
          %s542 = sadd.s32 %s537, %s541
          %s543 = smul.addr %s542, 64
          %s544 = scalar_lea.hbm %s6, %s543
          %s546 = sshll.u32 %s533, 4
          %s547 = int_to_ptr.vmem [resolvable:$true] %s546
          %549 = dma.vmem_to_hbm [thread:$0]  %s547, 128, %s544, %s530
        $region56: #{tpu_custom_call.1} parent=43 // pred_fallthru
          _
      $region44: #{tpu_custom_call.1} parent=5 // pred_fallthru
        _
      %p550 = scmp.le.s32.totalorder 2, %s21
      // Predicated region
      $region57: #{tpu_custom_call.1} parent=5 // pred_check
        %p551 = pneg %p550
      $region58: #{tpu_custom_call.1} parent=5 // pred_check_branch
        %553 = sbr.rel (%p551) target = $region60
      $region59: #{tpu_custom_call.1} parent=5 // pred_region
        %s554 = ssub.s32 %s21, 2
        // Predicated region
        $region61: #{tpu_custom_call.1} parent=59 // pred_check
          %p555 = pneg %p204
        $region62: #{tpu_custom_call.1} parent=59 // pred_check_branch
          %557 = sbr.rel (%p555) target = $region64
        $region63: #{tpu_custom_call.1} parent=59 // pred_region
          %s558 = sand.u32 %s189, 1
          %s559 = scalar_lea.sflag [#allocation4], %s558
          %s560 = sand.u32 %s189, 1
          %s561 = smul.addr %s560, 8
          %s562 = scalar_lea.vmem [#allocation7], %s561
          %563 = dma.done %s559, 128
        $region64: #{tpu_custom_call.1} parent=59 // pred_fallthru
          _
      $region60: #{tpu_custom_call.1} parent=5 // pred_fallthru
        _
    $region6: #{tpu_custom_call.1} parent=1 // loop_footer
      %s25 = sadd.s32 1, %s21
    $region7: #{tpu_custom_call.1} parent=1 // loop_footer_branch
      %20 = sbr.rel target = $region3
    $region8: #{tpu_custom_call.1} parent=1 // loop_exit
      _
    %564 = vsyncpa [#allocation3], 1
    %s565 = scalar_lea.sflag [#allocation3], 1
    %566 = vsyncpa %s565, 1
    %567 = vsyncpa [#allocation6], 1
    %s568 = scalar_lea.sflag [#allocation6], 1
    %569 = vsyncpa %s568, 1
    %570 = vsyncpa [#allocation4], 1
    %s571 = scalar_lea.sflag [#allocation4], 1
    %572 = vsyncpa %s571, 1

</llo_original>
